<compile_context>
chip_gen: v7x
topology: tpu7x:2x2x1
jax: 0.10.0
libtpu: 0.0.40
codegen_flags: <defaults>
</compile_context>

<pallas_src>
import math

import jax
import jax.numpy as jnp
import numpy as np
from jax.experimental import pallas as pl
from jax.experimental.pallas import tpu as pltpu


# ----------------------------- config (small) -------------------------------
BATCH = 2
SEQ = 8
TOK = BATCH * SEQ                     # tokens packed on the lane axis
HIDDEN = 32
NUM_HEADS = 4
HEAD_DIM = HIDDEN // NUM_HEADS
INTERMEDIATE = 64
RMS_EPS = 1e-5
NEG_INF = -1e30


# ------------------------------ Pallas kernel -------------------------------
def decoder_layer_kernel(x_ref, wqkv_ref, wo_ref, w1_ref, w2_ref, bias_ref,
                         o_ref):
    """Whole decoder layer, single invocation, feature-major activations.

    x_ref    : (H, TOK)    residual stream (features on sublanes, tokens on lanes)
    wqkv_ref : (3H, H)     fused Q|K|V weight, transposed; g_in and 1/sqrt(hd) folded
    wo_ref   : (H, H)      Wo^T
    w1_ref   : (I, H)      W1^T with post-attention gamma folded
    w2_ref   : (H, I)      W2^T
    bias_ref : (TOK, TOK)  0 within a batch block, -1e30 across batches
    """
    x_t = x_ref[...]                                          # (H, TOK) residual 1

    # ---- input RMSNorm (per token == per lane; gamma folded into wqkv) ----
    var = jnp.mean(x_t * x_t, axis=0, keepdims=True)          # (1, TOK)
    xn_t = x_t * jax.lax.rsqrt(var + RMS_EPS)

    # ---- fused QKV projection: ONE MXU push, (3H, H) @ (H, TOK) ----
    qkv_t = jnp.dot(wqkv_ref[...], xn_t,
                    preferred_element_type=jnp.float32)       # (3H, TOK)

    # (3H, TOK) -> (3, NH, hd, TOK): pure sublane-tile relabel (hd == 8); q/k/v
    # and heads separate along LEADING dims -> no lane slicing at all.
    qkv4 = qkv_t.reshape(3, NUM_HEADS, HEAD_DIM, TOK)
    q_t = qkv4[0]                                             # (NH, hd, TOK)
    k_t = qkv4[1]                                             # (NH, hd, TOK)
    v_t = qkv4[2]                                             # (NH, hd, TOK)

    # ---- attention: batched over heads (single batch dim), no per-head loop ----
    q_hnd = jnp.transpose(q_t, (0, 2, 1))                     # (NH, TOK, hd)
    s = jnp.einsum('hnd,hdm->hnm', q_hnd, k_t,
                   preferred_element_type=jnp.float32)        # (NH, TOK, TOK)
    # Block-diagonal bias keeps the softmax exactly per-batch (cross-batch
    # scores -> -1e30 -> probability 0).  Module default: attention_mask=None.
    s = s + bias_ref[...]
    m = jnp.max(s, axis=-1, keepdims=True)
    e = jnp.exp(s - m)
    denom = jnp.sum(e, axis=-1, keepdims=True)
    p = e * pl.reciprocal(denom, approx=True)                 # EUP slot
    ctx_t = jnp.einsum('hdm,hnm->hdn', v_t, p,
                       preferred_element_type=jnp.float32)    # (NH, hd, TOK)

    # ---- o_proj: ONE K=H dot; per-head accumulation stays inside the MXU ----
    ctx2d = ctx_t.reshape(HIDDEN, TOK)                        # rows ordered h*hd+d
    attn_t = jnp.dot(wo_ref[...], ctx2d,
                     preferred_element_type=jnp.float32)      # (H, TOK)

    h1_t = x_t + attn_t                                       # residual 2

    # ---- post-attention RMSNorm (gamma folded into w1) ----
    var2 = jnp.mean(h1_t * h1_t, axis=0, keepdims=True)
    h1n_t = h1_t * jax.lax.rsqrt(var2 + RMS_EPS)

    # ---- MLP: Linear -> SiLU -> Linear (elementwise kept in f32) ----
    up_t = jnp.dot(w1_ref[...], h1n_t,
                   preferred_element_type=jnp.float32)        # (I, TOK)
    up_t = up_t * (1.0 / (1.0 + jnp.exp(-up_t)))              # SiLU
    mlp_t = jnp.dot(w2_ref[...], up_t,
                    preferred_element_type=jnp.float32)       # (H, TOK)

    o_ref[...] = h1_t + mlp_t


# --------------------- one-time parameter preparation ------------------------
def prepare_params(wq, wk, wv, wo, w1, w2, g_in, g_post):
    """Called ONCE at parameter-load time (not in the per-call forward path).

    Folds RMSNorm gammas and the 1/sqrt(head_dim) attention scale into the
    projection weights, fuses Q|K|V, transposes everything into the
    feature-major (out, in) orientation the kernel consumes, and builds the
    constant block-diagonal batch-packing bias.  All folds are exact f32 math.
    """
    scale = 1.0 / math.sqrt(HEAD_DIM)
    wqkv_t = jnp.concatenate(
        [
            (g_in[:, None] * wq * scale).T,   # Q rows (scale pre-folded)
            (g_in[:, None] * wk).T,           # K rows
            (g_in[:, None] * wv).T,           # V rows
        ],
        axis=0,
    ).astype(jnp.float32)                      # (3H, H)
    wo_t = wo.T.astype(jnp.float32)            # (H, H)
    w1_t = (g_post[:, None] * w1).T.astype(jnp.float32)   # (I, H)
    w2_t = w2.T.astype(jnp.float32)            # (H, I)

    tok_batch = jnp.arange(TOK, dtype=jnp.int32) // SEQ
    bias = jnp.where(tok_batch[:, None] == tok_batch[None, :],
                     0.0, NEG_INF).astype(jnp.float32)     # (TOK, TOK)
    return wqkv_t, wo_t, w1_t, w2_t, bias


# ------------------------------ forward wrapper -------------------------------
def llama_decoder_layer(x, params):
    wqkv_t, wo_t, w1_t, w2_t, bias = params
    B, S, H = x.shape
    # Activation layout plumbing only (tiny, outside the kernel).
    x_t = x.reshape(B * S, H).T                # (H, TOK)

    vmem = pl.BlockSpec(memory_space=pltpu.MemorySpace.VMEM)
    out_t = pl.pallas_call(
        decoder_layer_kernel,
        out_shape=jax.ShapeDtypeStruct((H, B * S), jnp.float32),
        in_specs=[vmem, vmem, vmem, vmem, vmem, vmem],
        out_specs=vmem,
    )(x_t, wqkv_t, wo_t, w1_t, w2_t, bias)
    return out_t.T.reshape(B, S, H)


# ------------------------------ pure-JAX reference ---------------------------
def reference(x, wq, wk, wv, wo, w1, w2, g_in, g_post):
    def rmsnorm(h, g):
        var = jnp.mean(h * h, axis=-1, keepdims=True)
        return g * (h * jax.lax.rsqrt(var + RMS_EPS))

    B, S, H = x.shape
    residual = x
    hs = rmsnorm(x, g_in)
    q = (hs @ wq).reshape(B, S, NUM_HEADS, HEAD_DIM).transpose(0, 2, 1, 3)
    k = (hs @ wk).reshape(B, S, NUM_HEADS, HEAD_DIM).transpose(0, 2, 1, 3)
    v = (hs @ wv).reshape(B, S, NUM_HEADS, HEAD_DIM).transpose(0, 2, 1, 3)
    scores = jnp.einsum("bhqd,bhkd->bhqk", q, k) / math.sqrt(HEAD_DIM)
    p = jax.nn.softmax(scores, axis=-1)
    ctx = jnp.einsum("bhqk,bhkd->bhqd", p, v).transpose(0, 2, 1, 3).reshape(B, S, H)
    hs = residual + ctx @ wo
    residual = hs
    hs = rmsnorm(hs, g_post)
    up = hs @ w1
    return residual + (up * jax.nn.sigmoid(up)) @ w2


# --------------------------------- main ---------------------------------------
if __name__ == "__main__":
    key = jax.random.PRNGKey(0)
    keys = jax.random.split(key, 9)

    x = jax.random.normal(keys[0], (BATCH, SEQ, HIDDEN), dtype=jnp.float32)

    def init_w(k, shape):
        return jax.random.normal(k, shape, dtype=jnp.float32) / math.sqrt(shape[0])

    wq = init_w(keys[1], (HIDDEN, HIDDEN))
    wk = init_w(keys[2], (HIDDEN, HIDDEN))
    wv = init_w(keys[3], (HIDDEN, HIDDEN))
    wo = init_w(keys[4], (HIDDEN, HIDDEN))
    w1 = init_w(keys[5], (HIDDEN, INTERMEDIATE))
    w2 = init_w(keys[6], (INTERMEDIATE, HIDDEN))
    # Non-trivial RMSNorm gammas so the weight-folding path is actually tested.
    g_in = 1.0 + 0.1 * jax.random.normal(keys[7], (HIDDEN,), dtype=jnp.float32)
    g_post = 1.0 + 0.1 * jax.random.normal(keys[8], (HIDDEN,), dtype=jnp.float32)

    # One-time parameter preparation (feedback item 1).
    params = prepare_params(wq, wk, wv, wo, w1, w2, g_in, g_post)

    out = llama_decoder_layer(x, params)
    out = jax.block_until_ready(out)

    ref = reference(x, wq, wk, wv, wo, w1, w2, g_in, g_post)
    # Tolerance covers pl.reciprocal(approx=True) in the softmax denominator.
    np.testing.assert_allclose(np.asarray(out), np.asarray(ref),
                               rtol=5e-3, atol=5e-3)
    print("KERNEL_OK")
</pallas_src>

<mosaic_0001>
module attributes {stable_mosaic.version = 11 : i64} {
  func.func @decoder_layer_kernel(%arg0: memref<32x16xf32, #tpu.memory_space<vmem>>, %arg1: memref<96x32xf32, #tpu.memory_space<vmem>>, %arg2: memref<32x32xf32, #tpu.memory_space<vmem>>, %arg3: memref<64x32xf32, #tpu.memory_space<vmem>>, %arg4: memref<32x64xf32, #tpu.memory_space<vmem>>, %arg5: memref<16x16xf32, #tpu.memory_space<vmem>>, %arg6: memref<32x16xf32, #tpu.memory_space<vmem>>) attributes {dimension_semantics = [], scalar_prefetch = 0 : i64, scratch_operands = 0 : i64, tpu.core_type = #tpu.core_type<tc>} {
    %c0 = arith.constant 0 : index
    %c0_0 = arith.constant 0 : index
    %0 = vector.load %arg0[%c0, %c0_0] : memref<32x16xf32, #tpu.memory_space<vmem>>, vector<32x16xf32>
    %1 = arith.mulf %0, %0 : vector<32x16xf32>
    %cst = arith.constant dense<0.000000e+00> : vector<16xf32>
    %2 = vector.multi_reduction <add>, %1, %cst [0] : vector<32x16xf32> to vector<16xf32>
    %3 = vector.shape_cast %2 : vector<16xf32> to vector<1x16xf32>
    %cst_1 = arith.constant 3.200000e+01 : f32
    %4 = vector.broadcast %cst_1 : f32 to vector<1x16xf32>
    %5 = arith.divf %3, %4 : vector<1x16xf32>
    %cst_2 = arith.constant 9.99999974E-6 : f32
    %6 = vector.broadcast %cst_2 : f32 to vector<1x16xf32>
    %7 = arith.addf %5, %6 : vector<1x16xf32>
    %8 = math.rsqrt %7 : vector<1x16xf32>
    %9 = vector.broadcast %8 : vector<1x16xf32> to vector<32x16xf32>
    %10 = arith.mulf %0, %9 : vector<32x16xf32>
    %c0_3 = arith.constant 0 : index
    %c0_4 = arith.constant 0 : index
    %11 = vector.load %arg1[%c0_3, %c0_4] : memref<96x32xf32, #tpu.memory_space<vmem>>, vector<96x32xf32>
    %cst_5 = arith.constant dense<0.000000e+00> : vector<96x16xf32>
    %12 = tpu.matmul %11, %10, %cst_5 {dimension_numbers = #tpu.dot_dimension_numbers<[1], [0], [0], [1], [0, 0, 1, 1], [], []>} : vector<96x32xf32>, vector<32x16xf32>, vector<96x16xf32> -> vector<96x16xf32>
    %13 = vector.shape_cast %12 : vector<96x16xf32> to vector<3x4x8x16xf32>
    %14 = vector.extract_strided_slice %13 {offsets = [0, 0, 0, 0], sizes = [1, 4, 8, 16], strides = [1, 1, 1, 1]} : vector<3x4x8x16xf32> to vector<1x4x8x16xf32>
    %15 = vector.shape_cast %14 : vector<1x4x8x16xf32> to vector<4x8x16xf32>
    %16 = vector.extract_strided_slice %13 {offsets = [1, 0, 0, 0], sizes = [1, 4, 8, 16], strides = [1, 1, 1, 1]} : vector<3x4x8x16xf32> to vector<1x4x8x16xf32>
    %17 = vector.shape_cast %16 : vector<1x4x8x16xf32> to vector<4x8x16xf32>
    %18 = vector.extract_strided_slice %13 {offsets = [2, 0, 0, 0], sizes = [1, 4, 8, 16], strides = [1, 1, 1, 1]} : vector<3x4x8x16xf32> to vector<1x4x8x16xf32>
    %19 = vector.shape_cast %18 : vector<1x4x8x16xf32> to vector<4x8x16xf32>
    %20 = tpu.transpose %15, [0, 2, 1] : vector<4x8x16xf32> -> vector<4x16x8xf32>
    "tpu.trace_start"() <{level = 10 : i32, message = "hnd,hdm->hnm"}> : () -> ()
    %cst_6 = arith.constant dense<0.000000e+00> : vector<4x16x16xf32>
    %21 = tpu.matmul %20, %17, %cst_6 {dimension_numbers = #tpu.dot_dimension_numbers<[2], [1], [1], [2], [0, 0, 0, 1, 1, 2], [0], [0]>} : vector<4x16x8xf32>, vector<4x8x16xf32>, vector<4x16x16xf32> -> vector<4x16x16xf32>
    "tpu.trace_stop"() : () -> ()
    %c0_7 = arith.constant 0 : index
    %c0_8 = arith.constant 0 : index
    %22 = vector.load %arg5[%c0_7, %c0_8] : memref<16x16xf32, #tpu.memory_space<vmem>>, vector<16x16xf32>
    %23 = vector.shape_cast %22 : vector<16x16xf32> to vector<1x16x16xf32>
    %24 = vector.broadcast %23 : vector<1x16x16xf32> to vector<4x16x16xf32>
    %25 = arith.addf %21, %24 : vector<4x16x16xf32>
    %cst_9 = arith.constant dense<0xFF800000> : vector<4x16xf32>
    %26 = vector.multi_reduction <maximumf>, %25, %cst_9 [2] : vector<4x16x16xf32> to vector<4x16xf32>
    %27 = vector.shape_cast %26 : vector<4x16xf32> to vector<4x16x1xf32>
    %28 = vector.broadcast %27 : vector<4x16x1xf32> to vector<4x16x16xf32>
    %29 = arith.subf %25, %28 : vector<4x16x16xf32>
    %30 = math.exp %29 : vector<4x16x16xf32>
    %cst_10 = arith.constant dense<0.000000e+00> : vector<4x16xf32>
    %31 = vector.multi_reduction <add>, %30, %cst_10 [2] : vector<4x16x16xf32> to vector<4x16xf32>
    %32 = vector.shape_cast %31 : vector<4x16xf32> to vector<4x16x1xf32>
    %33 = tpu.reciprocal %32 {approx = true} : vector<4x16x1xf32> -> vector<4x16x1xf32>
    %34 = vector.broadcast %33 : vector<4x16x1xf32> to vector<4x16x16xf32>
    %35 = arith.mulf %30, %34 : vector<4x16x16xf32>
    "tpu.trace_start"() <{level = 10 : i32, message = "hdm,hnm->hdn"}> : () -> ()
    %cst_11 = arith.constant dense<0.000000e+00> : vector<4x8x16xf32>
    %36 = tpu.matmul %19, %35, %cst_11 {dimension_numbers = #tpu.dot_dimension_numbers<[2], [2], [1], [1], [0, 0, 0, 1, 1, 1], [0], [0]>} : vector<4x8x16xf32>, vector<4x16x16xf32>, vector<4x8x16xf32> -> vector<4x8x16xf32>
    "tpu.trace_stop"() : () -> ()
    %37 = vector.shape_cast %36 : vector<4x8x16xf32> to vector<32x16xf32>
    %c0_12 = arith.constant 0 : index
    %c0_13 = arith.constant 0 : index
    %38 = vector.load %arg2[%c0_12, %c0_13] : memref<32x32xf32, #tpu.memory_space<vmem>>, vector<32x32xf32>
    %cst_14 = arith.constant dense<0.000000e+00> : vector<32x16xf32>
    %39 = tpu.matmul %38, %37, %cst_14 {dimension_numbers = #tpu.dot_dimension_numbers<[1], [0], [0], [1], [0, 0, 1, 1], [], []>} : vector<32x32xf32>, vector<32x16xf32>, vector<32x16xf32> -> vector<32x16xf32>
    %40 = arith.addf %0, %39 : vector<32x16xf32>
    %41 = arith.mulf %40, %40 : vector<32x16xf32>
    %cst_15 = arith.constant dense<0.000000e+00> : vector<16xf32>
    %42 = vector.multi_reduction <add>, %41, %cst_15 [0] : vector<32x16xf32> to vector<16xf32>
    %43 = vector.shape_cast %42 : vector<16xf32> to vector<1x16xf32>
    %cst_16 = arith.constant 3.200000e+01 : f32
    %44 = vector.broadcast %cst_16 : f32 to vector<1x16xf32>
    %45 = arith.divf %43, %44 : vector<1x16xf32>
    %cst_17 = arith.constant 9.99999974E-6 : f32
    %46 = vector.broadcast %cst_17 : f32 to vector<1x16xf32>
    %47 = arith.addf %45, %46 : vector<1x16xf32>
    %48 = math.rsqrt %47 : vector<1x16xf32>
    %49 = vector.broadcast %48 : vector<1x16xf32> to vector<32x16xf32>
    %50 = arith.mulf %40, %49 : vector<32x16xf32>
    %c0_18 = arith.constant 0 : index
    %c0_19 = arith.constant 0 : index
    %51 = vector.load %arg3[%c0_18, %c0_19] : memref<64x32xf32, #tpu.memory_space<vmem>>, vector<64x32xf32>
    %cst_20 = arith.constant dense<0.000000e+00> : vector<64x16xf32>
    %52 = tpu.matmul %51, %50, %cst_20 {dimension_numbers = #tpu.dot_dimension_numbers<[1], [0], [0], [1], [0, 0, 1, 1], [], []>} : vector<64x32xf32>, vector<32x16xf32>, vector<64x16xf32> -> vector<64x16xf32>
    %cst_21 = arith.constant 0.000000e+00 : f32
    %53 = vector.broadcast %cst_21 : f32 to vector<64x16xf32>
    %54 = arith.subf %53, %52 : vector<64x16xf32>
    %55 = math.exp %54 : vector<64x16xf32>
    %cst_22 = arith.constant 1.000000e+00 : f32
    %56 = vector.broadcast %cst_22 : f32 to vector<64x16xf32>
    %57 = arith.addf %56, %55 : vector<64x16xf32>
    %cst_23 = arith.constant 1.000000e+00 : f32
    %58 = vector.broadcast %cst_23 : f32 to vector<64x16xf32>
    %59 = arith.divf %58, %57 : vector<64x16xf32>
    %60 = arith.mulf %52, %59 : vector<64x16xf32>
    %c0_24 = arith.constant 0 : index
    %c0_25 = arith.constant 0 : index
    %61 = vector.load %arg4[%c0_24, %c0_25] : memref<32x64xf32, #tpu.memory_space<vmem>>, vector<32x64xf32>
    %cst_26 = arith.constant dense<0.000000e+00> : vector<32x16xf32>
    %62 = tpu.matmul %61, %60, %cst_26 {dimension_numbers = #tpu.dot_dimension_numbers<[1], [0], [0], [1], [0, 0, 1, 1], [], []>} : vector<32x64xf32>, vector<64x16xf32>, vector<32x16xf32> -> vector<32x16xf32>
    %63 = arith.addf %40, %62 : vector<32x16xf32>
    %c0_27 = arith.constant 0 : index
    %c0_28 = arith.constant 0 : index
    %64 = vector.load %arg6[%c0_27, %c0_28] : memref<32x16xf32, #tpu.memory_space<vmem>>, vector<32x16xf32>
    tpu.vector_store %arg6[%c0_27, %c0_28], %63 {strides = array<i32>} : memref<32x16xf32, #tpu.memory_space<vmem>>, vector<32x16xf32>,
    return
  }
}

</mosaic_0001>

<llo_original>
// kernel: tpu_custom_call.1
$region0: #{tpu_custom_call.1}
  #allocation0 [shape = 'u32[]', space=smem, size = 0x4, offset = 0x4, fixed_abs, tag = 'smem constant byte address 0x4 - core index']
  #allocation1 [shape = 'u32[144,128]{1,0:T(1,128)}', space=vmem, size = 0x12000, scoped, tag = 'internal scratch']
  %s0 = inlined_call_operand.vmem [shape: f32[32,16], index: 0, kind: input, shape index: {}]
  %s1 = inlined_call_operand.vmem [shape: f32[96,32], index: 1, kind: input, shape index: {}]
  %s2 = inlined_call_operand.vmem [shape: f32[32,32], index: 2, kind: input, shape index: {}]
  %s3 = inlined_call_operand.vmem [shape: f32[64,32], index: 3, kind: input, shape index: {}]
  %s4 = inlined_call_operand.vmem [shape: f32[32,64], index: 4, kind: input, shape index: {}]
  %s5 = inlined_call_operand.vmem [shape: f32[16,16], index: 5, kind: input, shape index: {}]
  %s6 = inlined_call_operand.vmem [shape: f32[32,16], index: 6, kind: output, shape index: {}]
  %s7 = sld [smem:[#allocation0]]
  $region34: #{tpu_custom_call.1} parent=0
    _
  %s9 = ssub.s32 1, %s7
  %s10 = scalar_select 0, %s9, %s7
  // Predicated region
  $region2: #{tpu_custom_call.1} parent=0 // pred_check
    _
  $region3: #{tpu_custom_call.1} parent=0 // pred_check_branch
    %12 = sbr.rel (0) target = $region5
  $region4: #{tpu_custom_call.1} parent=0 // pred_region
    _
  $region5: #{tpu_custom_call.1} parent=0 // pred_fallthru
    _
  // Predicated region
  $region6: #{tpu_custom_call.1} parent=0 // pred_check
    _
  $region7: #{tpu_custom_call.1} parent=0 // pred_check_branch
    %14 = sbr.rel (0) target = $region9
  $region8: #{tpu_custom_call.1} parent=0 // pred_region
    _
  $region9: #{tpu_custom_call.1} parent=0 // pred_fallthru
    _
  // Predicated region
  $region10: #{tpu_custom_call.1} parent=0 // pred_check
    _
  $region11: #{tpu_custom_call.1} parent=0 // pred_check_branch
    %16 = sbr.rel (0) target = $region13
  $region12: #{tpu_custom_call.1} parent=0 // pred_region
    _
  $region13: #{tpu_custom_call.1} parent=0 // pred_fallthru
    _
  // Predicated region
  $region14: #{tpu_custom_call.1} parent=0 // pred_check
    _
  $region15: #{tpu_custom_call.1} parent=0 // pred_check_branch
    %18 = sbr.rel (0) target = $region17
  $region16: #{tpu_custom_call.1} parent=0 // pred_region
    _
  $region17: #{tpu_custom_call.1} parent=0 // pred_fallthru
    _
  // Predicated region
  $region18: #{tpu_custom_call.1} parent=0 // pred_check
    _
  $region19: #{tpu_custom_call.1} parent=0 // pred_check_branch
    %20 = sbr.rel (0) target = $region21
  $region20: #{tpu_custom_call.1} parent=0 // pred_region
    _
  $region21: #{tpu_custom_call.1} parent=0 // pred_fallthru
    _
  // Predicated region
  $region22: #{tpu_custom_call.1} parent=0 // pred_check
    _
  $region23: #{tpu_custom_call.1} parent=0 // pred_check_branch
    %22 = sbr.rel (0) target = $region25
  $region24: #{tpu_custom_call.1} parent=0 // pred_region
    _
  $region25: #{tpu_custom_call.1} parent=0 // pred_fallthru
    _
  %v23 = vld [vmem:[%s0] sm:$0xff]
  %v24 = vld [vmem:[%s0 + $0x8] sm:$0xff]
  %v25 = vld [vmem:[%s0 + $0x10] sm:$0xff]
  %v26 = vld [vmem:[%s0 + $0x18] sm:$0xff]
  %v27 = vmul.f32 %v23, %v23
  %v28 = vmul.f32 %v24, %v24
  %v29 = vmul.f32 %v25, %v25
  %v30 = vmul.f32 %v26, %v26
  %vm31 = vcmask 130048
  %v32 = vsel %vm31, %v27, 0.0
  %v33 = vsel %vm31, %v28, 0.0
  %v34 = vadd.f32 %v32, %v33
  %v35 = vsel %vm31, %v29, 0.0
  %v36 = vadd.f32 %v34, %v35
  %v37 = vsel %vm31, %v30, 0.0
  %v38 = vadd.f32 %v36, %v37
  %v39 = vrot.slane %v38, 4
  %v40 = vadd.f32 %v38, %v39
  %v41 = vrot.slane %v40, 2
  %v42 = vadd.f32 %v40, %v41
  %v43 = vrot.slane %v42, 1
  %v44 = vadd.f32 %v42, %v43
  %v45 = vrcp.pop 32.0
  %v46 = vmul.f32 %v44, %v45
  %v47 = vadd.f32 %v46, 1e-05
  %v48 = vrsqrt.pop %v47
  %v49 = vmul.f32 %v23, %v48
  %v50 = vmul.f32 %v24, %v48
  %v51 = vmul.f32 %v25, %v48
  %v52 = vmul.f32 %v26, %v48
  %v53 = vld [vmem:[%s1] sm:$0xff]
  %v54 = vld [vmem:[%s1 + $0x8] sm:$0xff]
  %v55 = vld [vmem:[%s1 + $0x10] sm:$0xff]
  %v56 = vld [vmem:[%s1 + $0x18] sm:$0xff]
  %v57 = vld [vmem:[%s1 + $0x20] sm:$0xff]
  %v58 = vld [vmem:[%s1 + $0x28] sm:$0xff]
  %v59 = vld [vmem:[%s1 + $0x30] sm:$0xff]
  %v60 = vld [vmem:[%s1 + $0x38] sm:$0xff]
  %v61 = vld [vmem:[%s1 + $0x40] sm:$0xff]
  %v62 = vld [vmem:[%s1 + $0x48] sm:$0xff]
  %v63 = vld [vmem:[%s1 + $0x50] sm:$0xff]
  %v64 = vld [vmem:[%s1 + $0x58] sm:$0xff]
  %vm65 = vcmask 261120
  %v67 = vsel %vm65, %v53, 0
  %v70 = vsel %vm65, %v54, 0
  %v73 = vsel %vm65, %v55, 0
  %v76 = vsel %vm65, %v56, 0
  %v79 = vsel %vm65, %v57, 0
  %v82 = vsel %vm65, %v58, 0
  %v85 = vsel %vm65, %v59, 0
  %v88 = vsel %vm65, %v60, 0
  %v91 = vsel %vm65, %v61, 0
  %v94 = vsel %vm65, %v62, 0
  %v97 = vsel %vm65, %v63, 0
  %v100 = vsel %vm65, %v64, 0
  %102 = vmatprep.subr.mxu0 0.0
  %103 = vmatpush1.msra.mxu0 %v49
  %104 = vmatprep.subr.mxu0 0.0
  %105 = vmatpush1.msra.mxu0 %v50
  %106 = vmatprep.subr.mxu0 0.0
  %107 = vmatpush1.msra.mxu0 %v51
  %108 = vmatprep.subr.mxu0 0.0
  %109 = vmatpush1.msra.mxu0 %v52
  %110 = vmatprep.subr.mxu0 0.0
  %111 = vmatpush1.msra.mxu0 0.0
  %112 = vmatprep.subr.mxu0 0.0
  %113 = vmatpush1.msra.mxu0 0.0
  %114 = vmatprep.subr.mxu0 0.0
  %115 = vmatpush1.msra.mxu0 0.0
  %116 = vmatprep.subr.mxu0 0.0
  %117 = vmatpush1.msra.mxu0 0.0
  %118 = vmatprep.subr.mxu0 0.0
  %119 = vmatpush1.msra.mxu0 0.0
  %120 = vmatprep.subr.mxu0 0.0
  %121 = vmatpush1.msra.mxu0 0.0
  %122 = vmatprep.subr.mxu0 0.0
  %123 = vmatpush1.msra.mxu0 0.0
  %124 = vmatprep.subr.mxu0 0.0
  %125 = vmatpush1.msra.mxu0 0.0
  %126 = vmatprep.subr.mxu0 0.0
  %127 = vmatpush1.msra.mxu0 0.0
  %128 = vmatprep.subr.mxu0 0.0
  %129 = vmatpush1.msra.mxu0 0.0
  %130 = vmatprep.subr.mxu0 0.0
  %131 = vmatpush1.msra.mxu0 0.0
  %132 = vmatprep.subr.mxu0 0.0
  %133 = vmatpush1.msra.mxu0 0.0
  %134 = vmatprep.subr.mxu0 0.0
  %135 = vmatpush1.msra.mxu0 0.0
  %136 = vmatprep.subr.mxu0 0.0
  %137 = vmatpush1.msra.mxu0 0.0
  %138 = vmatprep.subr.mxu0 0.0
  %139 = vmatpush1.msra.mxu0 0.0
  %140 = vmatprep.subr.mxu0 0.0
  %141 = vmatpush1.msra.mxu0 0.0
  %142 = vmatprep.subr.mxu0 0.0
  %143 = vmatpush1.msra.mxu0 0.0
  %144 = vmatprep.subr.mxu0 0.0
  %145 = vmatpush1.msra.mxu0 0.0
  %146 = vmatprep.subr.mxu0 0.0
  %147 = vmatpush1.msra.mxu0 0.0
  %148 = vmatprep.subr.mxu0 0.0
  %149 = vmatpush1.msra.mxu0 0.0
  %150 = vmatprep.subr.mxu0 0.0
  %151 = vmatpush1.msra.mxu0 0.0
  %152 = vmatprep.subr.mxu0 0.0
  %153 = vmatpush1.msra.mxu0 0.0
  %154 = vmatprep.subr.mxu0 0.0
  %155 = vmatpush1.msra.mxu0 0.0
  %156 = vmatprep.subr.mxu0 0.0
  %157 = vmatpush1.msra.mxu0 0.0
  %158 = vmatprep.subr.mxu0 0.0
  %159 = vmatpush1.msra.mxu0 0.0
  %160 = vmatprep.subr.mxu0 0.0
  %161 = vmatpush1.msra.mxu0 0.0
  %162 = vmatprep.subr.mxu0 0.0
  %163 = vmatpush1.msra.mxu0 0.0
  %164 = vmatprep.subr.mxu0 0.0
  %165 = vmatpush1.msra.mxu0 0.0
  %166 = vmatprep.mubr.f32.mxu0 0.0
  %167 = vmatmul.mubr.f32.gmra.mrb[0].mxu0 %v67
  %v168 = vpop.f32.mrb[0].mxu0
  %v169 = vadd.f32 0.0, %v168
  %v170 = vpop.f32.mrb[0].mxu0
  %171 = vmatprep.mubr.f32.mxu0 0.0
  %172 = vmatmul.mubr.f32.gmra.mrb[0].mxu0 %v70
  %v173 = vpop.f32.mrb[0].mxu0
  %v174 = vadd.f32 0.0, %v173
  %v175 = vpop.f32.mrb[0].mxu0
  %176 = vmatprep.mubr.f32.mxu0 0.0
  %177 = vmatmul.mubr.f32.gmra.mrb[0].mxu0 %v73
  %v178 = vpop.f32.mrb[0].mxu0
  %v179 = vadd.f32 0.0, %v178
  %v180 = vpop.f32.mrb[0].mxu0
  %181 = vmatprep.mubr.f32.mxu0 0.0
  %182 = vmatmul.mubr.f32.gmra.mrb[0].mxu0 %v76
  %v183 = vpop.f32.mrb[0].mxu0
  %v184 = vadd.f32 0.0, %v183
  %v185 = vpop.f32.mrb[0].mxu0
  %186 = vmatprep.mubr.f32.mxu0 0.0
  %187 = vmatmul.mubr.f32.gmra.mrb[0].mxu0 %v79
  %v188 = vpop.f32.mrb[0].mxu0
  %v189 = vadd.f32 0.0, %v188
  %v190 = vpop.f32.mrb[0].mxu0
  %191 = vmatprep.mubr.f32.mxu0 0.0
  %192 = vmatmul.mubr.f32.gmra.mrb[0].mxu0 %v82
  %v193 = vpop.f32.mrb[0].mxu0
  %v194 = vadd.f32 0.0, %v193
  %v195 = vpop.f32.mrb[0].mxu0
  %196 = vmatprep.mubr.f32.mxu0 0.0
  %197 = vmatmul.mubr.f32.gmra.mrb[0].mxu0 %v85
  %v198 = vpop.f32.mrb[0].mxu0
  %v199 = vadd.f32 0.0, %v198
  %v200 = vpop.f32.mrb[0].mxu0
  %201 = vmatprep.mubr.f32.mxu0 0.0
  %202 = vmatmul.mubr.f32.gmra.mrb[0].mxu0 %v88
  %v203 = vpop.f32.mrb[0].mxu0
  %v204 = vadd.f32 0.0, %v203
  %v205 = vpop.f32.mrb[0].mxu0
  %206 = vmatprep.mubr.f32.mxu0 0.0
  %207 = vmatmul.mubr.f32.gmra.mrb[0].mxu0 %v91
  %v208 = vpop.f32.mrb[0].mxu0
  %v209 = vadd.f32 0.0, %v208
  %v210 = vpop.f32.mrb[0].mxu0
  %211 = vmatprep.mubr.f32.mxu0 0.0
  %212 = vmatmul.mubr.f32.gmra.mrb[0].mxu0 %v94
  %v213 = vpop.f32.mrb[0].mxu0
  %v214 = vadd.f32 0.0, %v213
  %v215 = vpop.f32.mrb[0].mxu0
  %216 = vmatprep.mubr.f32.mxu0 0.0
  %217 = vmatmul.mubr.f32.gmra.mrb[0].mxu0 %v97
  %v218 = vpop.f32.mrb[0].mxu0
  %v219 = vadd.f32 0.0, %v218
  %v220 = vpop.f32.mrb[0].mxu0
  %221 = vmatprep.mubr.f32.mxu0 0.0
  %222 = vmatmul.mubr.f32.gmra.mrb[0].mxu0 %v100
  %v223 = vpop.f32.mrb[0].mxu0
  %v224 = vadd.f32 0.0, %v223
  %v225 = vpop.f32.mrb[0].mxu0
  %226 = vdwg.mxu0
  %227 = vxpose.xlu0.b32.start [1/16] %v169, 128
  %228 = vxpose.xlu0.b32.cont [2/16] 0.0, 128
  %229 = vxpose.xlu0.b32.cont [3/16] 0.0, 128
  %230 = vxpose.xlu0.b32.cont [4/16] 0.0, 128
  %231 = vxpose.xlu0.b32.cont [5/16] 0.0, 128
  %232 = vxpose.xlu0.b32.cont [6/16] 0.0, 128
  %233 = vxpose.xlu0.b32.cont [7/16] 0.0, 128
  %234 = vxpose.xlu0.b32.cont [8/16] 0.0, 128
  %235 = vxpose.xlu0.b32.cont [9/16] 0.0, 128
  %236 = vxpose.xlu0.b32.cont [10/16] 0.0, 128
  %237 = vxpose.xlu0.b32.cont [11/16] 0.0, 128
  %238 = vxpose.xlu0.b32.cont [12/16] 0.0, 128
  %239 = vxpose.xlu0.b32.cont [13/16] 0.0, 128
  %240 = vxpose.xlu0.b32.cont [14/16] 0.0, 128
  %241 = vxpose.xlu0.b32.cont [15/16] 0.0, 128
  %242 = vxpose.xlu0.b32.end [16/16] 0.0, 128
  %v243 = vpop.trf.xlu0
  %v244 = vpop.trf.xlu0
  %v245 = vpop.trf.xlu0
  %v246 = vpop.trf.xlu0
  %v247 = vpop.trf.xlu0
  %v248 = vpop.trf.xlu0
  %v249 = vpop.trf.xlu0
  %v250 = vpop.trf.xlu0
  %v251 = vpop.trf.xlu0
  %v252 = vpop.trf.xlu0
  %v253 = vpop.trf.xlu0
  %v254 = vpop.trf.xlu0
  %v255 = vpop.trf.xlu0
  %v256 = vpop.trf.xlu0
  %v257 = vpop.trf.xlu0
  %v258 = vpop.trf.xlu0
  %259 = vxpose.xlu0.b32.start [1/16] %v174, 128
  %260 = vxpose.xlu0.b32.cont [2/16] 0.0, 128
  %261 = vxpose.xlu0.b32.cont [3/16] 0.0, 128
  %262 = vxpose.xlu0.b32.cont [4/16] 0.0, 128
  %263 = vxpose.xlu0.b32.cont [5/16] 0.0, 128
  %264 = vxpose.xlu0.b32.cont [6/16] 0.0, 128
  %265 = vxpose.xlu0.b32.cont [7/16] 0.0, 128
  %266 = vxpose.xlu0.b32.cont [8/16] 0.0, 128
  %267 = vxpose.xlu0.b32.cont [9/16] 0.0, 128
  %268 = vxpose.xlu0.b32.cont [10/16] 0.0, 128
  %269 = vxpose.xlu0.b32.cont [11/16] 0.0, 128
  %270 = vxpose.xlu0.b32.cont [12/16] 0.0, 128
  %271 = vxpose.xlu0.b32.cont [13/16] 0.0, 128
  %272 = vxpose.xlu0.b32.cont [14/16] 0.0, 128
  %273 = vxpose.xlu0.b32.cont [15/16] 0.0, 128
  %274 = vxpose.xlu0.b32.end [16/16] 0.0, 128
  %v275 = vpop.trf.xlu0
  %v276 = vpop.trf.xlu0
  %v277 = vpop.trf.xlu0
  %v278 = vpop.trf.xlu0
  %v279 = vpop.trf.xlu0
  %v280 = vpop.trf.xlu0
  %v281 = vpop.trf.xlu0
  %v282 = vpop.trf.xlu0
  %v283 = vpop.trf.xlu0
  %v284 = vpop.trf.xlu0
  %v285 = vpop.trf.xlu0
  %v286 = vpop.trf.xlu0
  %v287 = vpop.trf.xlu0
  %v288 = vpop.trf.xlu0
  %v289 = vpop.trf.xlu0
  %v290 = vpop.trf.xlu0
  %291 = vxpose.xlu0.b32.start [1/16] %v179, 128
  %292 = vxpose.xlu0.b32.cont [2/16] 0.0, 128
  %293 = vxpose.xlu0.b32.cont [3/16] 0.0, 128
  %294 = vxpose.xlu0.b32.cont [4/16] 0.0, 128
  %295 = vxpose.xlu0.b32.cont [5/16] 0.0, 128
  %296 = vxpose.xlu0.b32.cont [6/16] 0.0, 128
  %297 = vxpose.xlu0.b32.cont [7/16] 0.0, 128
  %298 = vxpose.xlu0.b32.cont [8/16] 0.0, 128
  %299 = vxpose.xlu0.b32.cont [9/16] 0.0, 128
  %300 = vxpose.xlu0.b32.cont [10/16] 0.0, 128
  %301 = vxpose.xlu0.b32.cont [11/16] 0.0, 128
  %302 = vxpose.xlu0.b32.cont [12/16] 0.0, 128
  %303 = vxpose.xlu0.b32.cont [13/16] 0.0, 128
  %304 = vxpose.xlu0.b32.cont [14/16] 0.0, 128
  %305 = vxpose.xlu0.b32.cont [15/16] 0.0, 128
  %306 = vxpose.xlu0.b32.end [16/16] 0.0, 128
  %v307 = vpop.trf.xlu0
  %v308 = vpop.trf.xlu0
  %v309 = vpop.trf.xlu0
  %v310 = vpop.trf.xlu0
  %v311 = vpop.trf.xlu0
  %v312 = vpop.trf.xlu0
  %v313 = vpop.trf.xlu0
  %v314 = vpop.trf.xlu0
  %v315 = vpop.trf.xlu0
  %v316 = vpop.trf.xlu0
  %v317 = vpop.trf.xlu0
  %v318 = vpop.trf.xlu0
  %v319 = vpop.trf.xlu0
  %v320 = vpop.trf.xlu0
  %v321 = vpop.trf.xlu0
  %v322 = vpop.trf.xlu0
  %323 = vxpose.xlu0.b32.start [1/16] %v184, 128
  %324 = vxpose.xlu0.b32.cont [2/16] 0.0, 128
  %325 = vxpose.xlu0.b32.cont [3/16] 0.0, 128
  %326 = vxpose.xlu0.b32.cont [4/16] 0.0, 128
  %327 = vxpose.xlu0.b32.cont [5/16] 0.0, 128
  %328 = vxpose.xlu0.b32.cont [6/16] 0.0, 128
  %329 = vxpose.xlu0.b32.cont [7/16] 0.0, 128
  %330 = vxpose.xlu0.b32.cont [8/16] 0.0, 128
  %331 = vxpose.xlu0.b32.cont [9/16] 0.0, 128
  %332 = vxpose.xlu0.b32.cont [10/16] 0.0, 128
  %333 = vxpose.xlu0.b32.cont [11/16] 0.0, 128
  %334 = vxpose.xlu0.b32.cont [12/16] 0.0, 128
  %335 = vxpose.xlu0.b32.cont [13/16] 0.0, 128
  %336 = vxpose.xlu0.b32.cont [14/16] 0.0, 128
  %337 = vxpose.xlu0.b32.cont [15/16] 0.0, 128
  %338 = vxpose.xlu0.b32.end [16/16] 0.0, 128
  %v339 = vpop.trf.xlu0
  %v340 = vpop.trf.xlu0
  %v341 = vpop.trf.xlu0
  %v342 = vpop.trf.xlu0
  %v343 = vpop.trf.xlu0
  %v344 = vpop.trf.xlu0
  %v345 = vpop.trf.xlu0
  %v346 = vpop.trf.xlu0
  %v347 = vpop.trf.xlu0
  %v348 = vpop.trf.xlu0
  %v349 = vpop.trf.xlu0
  %v350 = vpop.trf.xlu0
  %v351 = vpop.trf.xlu0
  %v352 = vpop.trf.xlu0
  %v353 = vpop.trf.xlu0
  %v354 = vpop.trf.xlu0
  %v355 = vld [vmem:[%s5] sm:$0xff]
  %v356 = vld [vmem:[%s5 + $0x8] sm:$0xff]
  %vm357 = vcmask 64512
  %v359 = vsel %vm357, %v243, 0
  %v362 = vsel %vm357, %v244, 0
  %364 = vmatprep.subr.mxu0 0.0
  %365 = vmatpush1.msra.mxu0 %v189
  %366 = vmatprep.subr.mxu0 0.0
  %367 = vmatpush1.msra.mxu0 0.0
  %368 = vmatprep.subr.mxu0 0.0
  %369 = vmatpush1.msra.mxu0 0.0
  %370 = vmatprep.subr.mxu0 0.0
  %371 = vmatpush1.msra.mxu0 0.0
  %372 = vmatprep.subr.mxu0 0.0
  %373 = vmatpush1.msra.mxu0 0.0
  %374 = vmatprep.subr.mxu0 0.0
  %375 = vmatpush1.msra.mxu0 0.0
  %376 = vmatprep.subr.mxu0 0.0
  %377 = vmatpush1.msra.mxu0 0.0
  %378 = vmatprep.subr.mxu0 0.0
  %379 = vmatpush1.msra.mxu0 0.0
  %380 = vmatprep.subr.mxu0 0.0
  %381 = vmatpush1.msra.mxu0 0.0
  %382 = vmatprep.subr.mxu0 0.0
  %383 = vmatpush1.msra.mxu0 0.0
  %384 = vmatprep.subr.mxu0 0.0
  %385 = vmatpush1.msra.mxu0 0.0
  %386 = vmatprep.subr.mxu0 0.0
  %387 = vmatpush1.msra.mxu0 0.0
  %388 = vmatprep.subr.mxu0 0.0
  %389 = vmatpush1.msra.mxu0 0.0
  %390 = vmatprep.subr.mxu0 0.0
  %391 = vmatpush1.msra.mxu0 0.0
  %392 = vmatprep.subr.mxu0 0.0
  %393 = vmatpush1.msra.mxu0 0.0
  %394 = vmatprep.subr.mxu0 0.0
  %395 = vmatpush1.msra.mxu0 0.0
  %396 = vmatprep.subr.mxu0 0.0
  %397 = vmatpush1.msra.mxu0 0.0
  %398 = vmatprep.subr.mxu0 0.0
  %399 = vmatpush1.msra.mxu0 0.0
  %400 = vmatprep.subr.mxu0 0.0
  %401 = vmatpush1.msra.mxu0 0.0
  %402 = vmatprep.subr.mxu0 0.0
  %403 = vmatpush1.msra.mxu0 0.0
  %404 = vmatprep.subr.mxu0 0.0
  %405 = vmatpush1.msra.mxu0 0.0
  %406 = vmatprep.subr.mxu0 0.0
  %407 = vmatpush1.msra.mxu0 0.0
  %408 = vmatprep.subr.mxu0 0.0
  %409 = vmatpush1.msra.mxu0 0.0
  %410 = vmatprep.subr.mxu0 0.0
  %411 = vmatpush1.msra.mxu0 0.0
  %412 = vmatprep.subr.mxu0 0.0
  %413 = vmatpush1.msra.mxu0 0.0
  %414 = vmatprep.subr.mxu0 0.0
  %415 = vmatpush1.msra.mxu0 0.0
  %416 = vmatprep.subr.mxu0 0.0
  %417 = vmatpush1.msra.mxu0 0.0
  %418 = vmatprep.subr.mxu0 0.0
  %419 = vmatpush1.msra.mxu0 0.0
  %420 = vmatprep.subr.mxu0 0.0
  %421 = vmatpush1.msra.mxu0 0.0
  %422 = vmatprep.subr.mxu0 0.0
  %423 = vmatpush1.msra.mxu0 0.0
  %424 = vmatprep.subr.mxu0 0.0
  %425 = vmatpush1.msra.mxu0 0.0
  %426 = vmatprep.subr.mxu0 0.0
  %427 = vmatpush1.msra.mxu0 0.0
  %428 = vmatprep.mubr.f32.mxu0 0.0
  %429 = vmatmul.mubr.f32.gmra.mrb[0].mxu0 %v359
  %v430 = vpop.f32.mrb[0].mxu0
  %v431 = vadd.f32 %v355, %v430
  %v432 = vpop.f32.mrb[0].mxu0
  %433 = vmatprep.mubr.f32.mxu0 0.0
  %434 = vmatmul.mubr.f32.gmra.mrb[0].mxu0 %v362
  %v435 = vpop.f32.mrb[0].mxu0
  %v436 = vadd.f32 %v356, %v435
  %v437 = vpop.f32.mrb[0].mxu0
  %438 = vdwg.mxu0
  %v440 = vsel %vm357, %v275, 0
  %v443 = vsel %vm357, %v276, 0
  %445 = vmatprep.subr.mxu0 0.0
  %446 = vmatpush1.msra.mxu0 %v194
  %447 = vmatprep.subr.mxu0 0.0
  %448 = vmatpush1.msra.mxu0 0.0
  %449 = vmatprep.subr.mxu0 0.0
  %450 = vmatpush1.msra.mxu0 0.0
  %451 = vmatprep.subr.mxu0 0.0
  %452 = vmatpush1.msra.mxu0 0.0
  %453 = vmatprep.subr.mxu0 0.0
  %454 = vmatpush1.msra.mxu0 0.0
  %455 = vmatprep.subr.mxu0 0.0
  %456 = vmatpush1.msra.mxu0 0.0
  %457 = vmatprep.subr.mxu0 0.0
  %458 = vmatpush1.msra.mxu0 0.0
  %459 = vmatprep.subr.mxu0 0.0
  %460 = vmatpush1.msra.mxu0 0.0
  %461 = vmatprep.subr.mxu0 0.0
  %462 = vmatpush1.msra.mxu0 0.0
  %463 = vmatprep.subr.mxu0 0.0
  %464 = vmatpush1.msra.mxu0 0.0
  %465 = vmatprep.subr.mxu0 0.0
  %466 = vmatpush1.msra.mxu0 0.0
  %467 = vmatprep.subr.mxu0 0.0
  %468 = vmatpush1.msra.mxu0 0.0
  %469 = vmatprep.subr.mxu0 0.0
  %470 = vmatpush1.msra.mxu0 0.0
  %471 = vmatprep.subr.mxu0 0.0
  %472 = vmatpush1.msra.mxu0 0.0
  %473 = vmatprep.subr.mxu0 0.0
  %474 = vmatpush1.msra.mxu0 0.0
  %475 = vmatprep.subr.mxu0 0.0
  %476 = vmatpush1.msra.mxu0 0.0
  %477 = vmatprep.subr.mxu0 0.0
  %478 = vmatpush1.msra.mxu0 0.0
  %479 = vmatprep.subr.mxu0 0.0
  %480 = vmatpush1.msra.mxu0 0.0
  %481 = vmatprep.subr.mxu0 0.0
  %482 = vmatpush1.msra.mxu0 0.0
  %483 = vmatprep.subr.mxu0 0.0
  %484 = vmatpush1.msra.mxu0 0.0
  %485 = vmatprep.subr.mxu0 0.0
  %486 = vmatpush1.msra.mxu0 0.0
  %487 = vmatprep.subr.mxu0 0.0
  %488 = vmatpush1.msra.mxu0 0.0
  %489 = vmatprep.subr.mxu0 0.0
  %490 = vmatpush1.msra.mxu0 0.0
  %491 = vmatprep.subr.mxu0 0.0
  %492 = vmatpush1.msra.mxu0 0.0
  %493 = vmatprep.subr.mxu0 0.0
  %494 = vmatpush1.msra.mxu0 0.0
  %495 = vmatprep.subr.mxu0 0.0
  %496 = vmatpush1.msra.mxu0 0.0
  %497 = vmatprep.subr.mxu0 0.0
  %498 = vmatpush1.msra.mxu0 0.0
  %499 = vmatprep.subr.mxu0 0.0
  %500 = vmatpush1.msra.mxu0 0.0
  %501 = vmatprep.subr.mxu0 0.0
  %502 = vmatpush1.msra.mxu0 0.0
  %503 = vmatprep.subr.mxu0 0.0
  %504 = vmatpush1.msra.mxu0 0.0
  %505 = vmatprep.subr.mxu0 0.0
  %506 = vmatpush1.msra.mxu0 0.0
  %507 = vmatprep.subr.mxu0 0.0
  %508 = vmatpush1.msra.mxu0 0.0
  %509 = vmatprep.mubr.f32.mxu0 0.0
  %510 = vmatmul.mubr.f32.gmra.mrb[0].mxu0 %v440
  %v511 = vpop.f32.mrb[0].mxu0
  %v512 = vadd.f32 %v355, %v511
  %v513 = vpop.f32.mrb[0].mxu0
  %514 = vmatprep.mubr.f32.mxu0 0.0
  %515 = vmatmul.mubr.f32.gmra.mrb[0].mxu0 %v443
  %v516 = vpop.f32.mrb[0].mxu0
  %v517 = vadd.f32 %v356, %v516
  %v518 = vpop.f32.mrb[0].mxu0
  %519 = vdwg.mxu0
  %v521 = vsel %vm357, %v307, 0
  %v524 = vsel %vm357, %v308, 0
  %526 = vmatprep.subr.mxu0 0.0
  %527 = vmatpush1.msra.mxu0 %v199
  %528 = vmatprep.subr.mxu0 0.0
  %529 = vmatpush1.msra.mxu0 0.0
  %530 = vmatprep.subr.mxu0 0.0
  %531 = vmatpush1.msra.mxu0 0.0
  %532 = vmatprep.subr.mxu0 0.0
  %533 = vmatpush1.msra.mxu0 0.0
  %534 = vmatprep.subr.mxu0 0.0
  %535 = vmatpush1.msra.mxu0 0.0
  %536 = vmatprep.subr.mxu0 0.0
  %537 = vmatpush1.msra.mxu0 0.0
  %538 = vmatprep.subr.mxu0 0.0
  %539 = vmatpush1.msra.mxu0 0.0
  %540 = vmatprep.subr.mxu0 0.0
  %541 = vmatpush1.msra.mxu0 0.0
  %542 = vmatprep.subr.mxu0 0.0
  %543 = vmatpush1.msra.mxu0 0.0
  %544 = vmatprep.subr.mxu0 0.0
  %545 = vmatpush1.msra.mxu0 0.0
  %546 = vmatprep.subr.mxu0 0.0
  %547 = vmatpush1.msra.mxu0 0.0
  %548 = vmatprep.subr.mxu0 0.0
  %549 = vmatpush1.msra.mxu0 0.0
  %550 = vmatprep.subr.mxu0 0.0
  %551 = vmatpush1.msra.mxu0 0.0
  %552 = vmatprep.subr.mxu0 0.0
  %553 = vmatpush1.msra.mxu0 0.0
  %554 = vmatprep.subr.mxu0 0.0
  %555 = vmatpush1.msra.mxu0 0.0
  %556 = vmatprep.subr.mxu0 0.0
  %557 = vmatpush1.msra.mxu0 0.0
  %558 = vmatprep.subr.mxu0 0.0
  %559 = vmatpush1.msra.mxu0 0.0
  %560 = vmatprep.subr.mxu0 0.0
  %561 = vmatpush1.msra.mxu0 0.0
  %562 = vmatprep.subr.mxu0 0.0
  %563 = vmatpush1.msra.mxu0 0.0
  %564 = vmatprep.subr.mxu0 0.0
  %565 = vmatpush1.msra.mxu0 0.0
  %566 = vmatprep.subr.mxu0 0.0
  %567 = vmatpush1.msra.mxu0 0.0
  %568 = vmatprep.subr.mxu0 0.0
  %569 = vmatpush1.msra.mxu0 0.0
  %570 = vmatprep.subr.mxu0 0.0
  %571 = vmatpush1.msra.mxu0 0.0
  %572 = vmatprep.subr.mxu0 0.0
  %573 = vmatpush1.msra.mxu0 0.0
  %574 = vmatprep.subr.mxu0 0.0
  %575 = vmatpush1.msra.mxu0 0.0
  %576 = vmatprep.subr.mxu0 0.0
  %577 = vmatpush1.msra.mxu0 0.0
  %578 = vmatprep.subr.mxu0 0.0
  %579 = vmatpush1.msra.mxu0 0.0
  %580 = vmatprep.subr.mxu0 0.0
  %581 = vmatpush1.msra.mxu0 0.0
  %582 = vmatprep.subr.mxu0 0.0
  %583 = vmatpush1.msra.mxu0 0.0
  %584 = vmatprep.subr.mxu0 0.0
  %585 = vmatpush1.msra.mxu0 0.0
  %586 = vmatprep.subr.mxu0 0.0
  %587 = vmatpush1.msra.mxu0 0.0
  %588 = vmatprep.subr.mxu0 0.0
  %589 = vmatpush1.msra.mxu0 0.0
  %590 = vmatprep.mubr.f32.mxu0 0.0
  %591 = vmatmul.mubr.f32.gmra.mrb[0].mxu0 %v521
  %v592 = vpop.f32.mrb[0].mxu0
  %v593 = vadd.f32 %v355, %v592
  %v594 = vpop.f32.mrb[0].mxu0
  %595 = vmatprep.mubr.f32.mxu0 0.0
  %596 = vmatmul.mubr.f32.gmra.mrb[0].mxu0 %v524
  %v597 = vpop.f32.mrb[0].mxu0
  %v598 = vadd.f32 %v356, %v597
  %v599 = vpop.f32.mrb[0].mxu0
  %600 = vdwg.mxu0
  %v602 = vsel %vm357, %v339, 0
  %v605 = vsel %vm357, %v340, 0
  %607 = vmatprep.subr.mxu0 0.0
  %608 = vmatpush1.msra.mxu0 %v204
  %609 = vmatprep.subr.mxu0 0.0
  %610 = vmatpush1.msra.mxu0 0.0
  %611 = vmatprep.subr.mxu0 0.0
  %612 = vmatpush1.msra.mxu0 0.0
  %613 = vmatprep.subr.mxu0 0.0
  %614 = vmatpush1.msra.mxu0 0.0
  %615 = vmatprep.subr.mxu0 0.0
  %616 = vmatpush1.msra.mxu0 0.0
  %617 = vmatprep.subr.mxu0 0.0
  %618 = vmatpush1.msra.mxu0 0.0
  %619 = vmatprep.subr.mxu0 0.0
  %620 = vmatpush1.msra.mxu0 0.0
  %621 = vmatprep.subr.mxu0 0.0
  %622 = vmatpush1.msra.mxu0 0.0
  %623 = vmatprep.subr.mxu0 0.0
  %624 = vmatpush1.msra.mxu0 0.0
  %625 = vmatprep.subr.mxu0 0.0
  %626 = vmatpush1.msra.mxu0 0.0
  %627 = vmatprep.subr.mxu0 0.0
  %628 = vmatpush1.msra.mxu0 0.0
  %629 = vmatprep.subr.mxu0 0.0
  %630 = vmatpush1.msra.mxu0 0.0
  %631 = vmatprep.subr.mxu0 0.0
  %632 = vmatpush1.msra.mxu0 0.0
  %633 = vmatprep.subr.mxu0 0.0
  %634 = vmatpush1.msra.mxu0 0.0
  %635 = vmatprep.subr.mxu0 0.0
  %636 = vmatpush1.msra.mxu0 0.0
  %637 = vmatprep.subr.mxu0 0.0
  %638 = vmatpush1.msra.mxu0 0.0
  %639 = vmatprep.subr.mxu0 0.0
  %640 = vmatpush1.msra.mxu0 0.0
  %641 = vmatprep.subr.mxu0 0.0
  %642 = vmatpush1.msra.mxu0 0.0
  %643 = vmatprep.subr.mxu0 0.0
  %644 = vmatpush1.msra.mxu0 0.0
  %645 = vmatprep.subr.mxu0 0.0
  %646 = vmatpush1.msra.mxu0 0.0
  %647 = vmatprep.subr.mxu0 0.0
  %648 = vmatpush1.msra.mxu0 0.0
  %649 = vmatprep.subr.mxu0 0.0
  %650 = vmatpush1.msra.mxu0 0.0
  %651 = vmatprep.subr.mxu0 0.0
  %652 = vmatpush1.msra.mxu0 0.0
  %653 = vmatprep.subr.mxu0 0.0
  %654 = vmatpush1.msra.mxu0 0.0
  %655 = vmatprep.subr.mxu0 0.0
  %656 = vmatpush1.msra.mxu0 0.0
  %657 = vmatprep.subr.mxu0 0.0
  %658 = vmatpush1.msra.mxu0 0.0
  %659 = vmatprep.subr.mxu0 0.0
  %660 = vmatpush1.msra.mxu0 0.0
  %661 = vmatprep.subr.mxu0 0.0
  %662 = vmatpush1.msra.mxu0 0.0
  %663 = vmatprep.subr.mxu0 0.0
  %664 = vmatpush1.msra.mxu0 0.0
  %665 = vmatprep.subr.mxu0 0.0
  %666 = vmatpush1.msra.mxu0 0.0
  %667 = vmatprep.subr.mxu0 0.0
  %668 = vmatpush1.msra.mxu0 0.0
  %669 = vmatprep.subr.mxu0 0.0
  %670 = vmatpush1.msra.mxu0 0.0
  %671 = vmatprep.mubr.f32.mxu0 0.0
  %672 = vmatmul.mubr.f32.gmra.mrb[0].mxu0 %v602
  %v673 = vpop.f32.mrb[0].mxu0
  %v674 = vadd.f32 %v355, %v673
  %v675 = vpop.f32.mrb[0].mxu0
  %676 = vmatprep.mubr.f32.mxu0 0.0
  %677 = vmatmul.mubr.f32.gmra.mrb[0].mxu0 %v605
  %v678 = vpop.f32.mrb[0].mxu0
  %v679 = vadd.f32 %v356, %v678
  %v680 = vpop.f32.mrb[0].mxu0
  %681 = vdwg.mxu0
  %v682 = vsel %vm31, %v431, -inf
  %683 = vmax.xlane.f32.xlu0 %v682
  %v684 = vpop.xlane.xlu0 %683
  %v685 = vsel %vm31, %v436, -inf
  %686 = vmax.xlane.f32.xlu0 %v685
  %v687 = vpop.xlane.xlu0 %686
  %v688 = vsel %vm31, %v512, -inf
  %689 = vmax.xlane.f32.xlu0 %v688
  %v690 = vpop.xlane.xlu0 %689
  %v691 = vsel %vm31, %v517, -inf
  %692 = vmax.xlane.f32.xlu0 %v691
  %v693 = vpop.xlane.xlu0 %692
  %v694 = vsel %vm31, %v593, -inf
  %695 = vmax.xlane.f32.xlu0 %v694
  %v696 = vpop.xlane.xlu0 %695
  %v697 = vsel %vm31, %v598, -inf
  %698 = vmax.xlane.f32.xlu0 %v697
  %v699 = vpop.xlane.xlu0 %698
  %v700 = vsel %vm31, %v674, -inf
  %701 = vmax.xlane.f32.xlu0 %v700
  %v702 = vpop.xlane.xlu0 %701
  %v703 = vsel %vm31, %v679, -inf
  %704 = vmax.xlane.f32.xlu0 %v703
  %v705 = vpop.xlane.xlu0 %704
  %v706 = vsub.f32 %v431, %v684
  %v707 = vsub.f32 %v436, %v687
  %v708 = vsub.f32 %v512, %v690
  %v709 = vsub.f32 %v517, %v693
  %v710 = vsub.f32 %v593, %v696
  %v711 = vsub.f32 %v598, %v699
  %v712 = vsub.f32 %v674, %v702
  %v713 = vsub.f32 %v679, %v705
  %v714 = vmul.f32 %v706, 1.442695
  %v715 = vpow.pop %v714
  %v716 = vmul.f32 %v707, 1.442695
  %v717 = vpow.pop %v716
  %v718 = vmul.f32 %v708, 1.442695
  %v719 = vpow.pop %v718
  %v720 = vmul.f32 %v709, 1.442695
  %v721 = vpow.pop %v720
  %v722 = vmul.f32 %v710, 1.442695
  %v723 = vpow.pop %v722
  %v724 = vmul.f32 %v711, 1.442695
  %v725 = vpow.pop %v724
  %v726 = vmul.f32 %v712, 1.442695
  %v727 = vpow.pop %v726
  %v728 = vmul.f32 %v713, 1.442695
  %v729 = vpow.pop %v728
  %v730 = vsel %vm31, %v715, 0.0
  %731 = vadd.xlane.f32.xlu0 %v730
  %v732 = vpop.xlane.xlu0 %731
  %v733 = vsel %vm31, %v717, 0.0
  %734 = vadd.xlane.f32.xlu0 %v733
  %v735 = vpop.xlane.xlu0 %734
  %v736 = vsel %vm31, %v719, 0.0
  %737 = vadd.xlane.f32.xlu0 %v736
  %v738 = vpop.xlane.xlu0 %737
  %v739 = vsel %vm31, %v721, 0.0
  %740 = vadd.xlane.f32.xlu0 %v739
  %v741 = vpop.xlane.xlu0 %740
  %v742 = vsel %vm31, %v723, 0.0
  %743 = vadd.xlane.f32.xlu0 %v742
  %v744 = vpop.xlane.xlu0 %743
  %v745 = vsel %vm31, %v725, 0.0
  %746 = vadd.xlane.f32.xlu0 %v745
  %v747 = vpop.xlane.xlu0 %746
  %v748 = vsel %vm31, %v727, 0.0
  %749 = vadd.xlane.f32.xlu0 %v748
  %v750 = vpop.xlane.xlu0 %749
  %v751 = vsel %vm31, %v729, 0.0
  %752 = vadd.xlane.f32.xlu0 %v751
  %v753 = vpop.xlane.xlu0 %752
  %v754 = vrcp.pop %v732
  %v755 = vrcp.pop %v735
  %v756 = vrcp.pop %v738
  %v757 = vrcp.pop %v741
  %v758 = vrcp.pop %v744
  %v759 = vrcp.pop %v747
  %v760 = vrcp.pop %v750
  %v761 = vrcp.pop %v753
  %v762 = vmul.f32 %v715, %v754
  %v763 = vmul.f32 %v717, %v755
  %v764 = vmul.f32 %v719, %v756
  %v765 = vmul.f32 %v721, %v757
  %v766 = vmul.f32 %v723, %v758
  %v767 = vmul.f32 %v725, %v759
  %v768 = vmul.f32 %v727, %v760
  %v769 = vmul.f32 %v729, %v761
  %v771 = vsel %vm31, %v209, 0
  %v774 = vsel %vm31, %v762, 0
  %v777 = vsel %vm31, %v763, 0
  %779 = vmatprep.subr.mxu0 0.0
  %780 = vmatpush1.xpose.msra.mxu0 %v774
  %781 = vmatprep.subr.mxu0 0.0
  %782 = vmatpush1.xpose.msra.mxu0 %v777
  %783 = vmatprep.subr.mxu0 0.0
  %784 = vmatpush1.xpose.msra.mxu0 0.0
  %785 = vmatprep.subr.mxu0 0.0
  %786 = vmatpush1.xpose.msra.mxu0 0.0
  %787 = vmatprep.subr.mxu0 0.0
  %788 = vmatpush1.xpose.msra.mxu0 0.0
  %789 = vmatprep.subr.mxu0 0.0
  %790 = vmatpush1.xpose.msra.mxu0 0.0
  %791 = vmatprep.subr.mxu0 0.0
  %792 = vmatpush1.xpose.msra.mxu0 0.0
  %793 = vmatprep.subr.mxu0 0.0
  %794 = vmatpush1.xpose.msra.mxu0 0.0
  %795 = vmatprep.subr.mxu0 0.0
  %796 = vmatpush1.xpose.msra.mxu0 0.0
  %797 = vmatprep.subr.mxu0 0.0
  %798 = vmatpush1.xpose.msra.mxu0 0.0
  %799 = vmatprep.subr.mxu0 0.0
  %800 = vmatpush1.xpose.msra.mxu0 0.0
  %801 = vmatprep.subr.mxu0 0.0
  %802 = vmatpush1.xpose.msra.mxu0 0.0
  %803 = vmatprep.subr.mxu0 0.0
  %804 = vmatpush1.xpose.msra.mxu0 0.0
  %805 = vmatprep.subr.mxu0 0.0
  %806 = vmatpush1.xpose.msra.mxu0 0.0
  %807 = vmatprep.subr.mxu0 0.0
  %808 = vmatpush1.xpose.msra.mxu0 0.0
  %809 = vmatprep.subr.mxu0 0.0
  %810 = vmatpush1.xpose.msra.mxu0 0.0
  %811 = vmatprep.subr.mxu0 0.0
  %812 = vmatpush1.xpose.msra.mxu0 0.0
  %813 = vmatprep.subr.mxu0 0.0
  %814 = vmatpush1.xpose.msra.mxu0 0.0
  %815 = vmatprep.subr.mxu0 0.0
  %816 = vmatpush1.xpose.msra.mxu0 0.0
  %817 = vmatprep.subr.mxu0 0.0
  %818 = vmatpush1.xpose.msra.mxu0 0.0
  %819 = vmatprep.subr.mxu0 0.0
  %820 = vmatpush1.xpose.msra.mxu0 0.0
  %821 = vmatprep.subr.mxu0 0.0
  %822 = vmatpush1.xpose.msra.mxu0 0.0
  %823 = vmatprep.subr.mxu0 0.0
  %824 = vmatpush1.xpose.msra.mxu0 0.0
  %825 = vmatprep.subr.mxu0 0.0
  %826 = vmatpush1.xpose.msra.mxu0 0.0
  %827 = vmatprep.subr.mxu0 0.0
  %828 = vmatpush1.xpose.msra.mxu0 0.0
  %829 = vmatprep.subr.mxu0 0.0
  %830 = vmatpush1.xpose.msra.mxu0 0.0
  %831 = vmatprep.subr.mxu0 0.0
  %832 = vmatpush1.xpose.msra.mxu0 0.0
  %833 = vmatprep.subr.mxu0 0.0
  %834 = vmatpush1.xpose.msra.mxu0 0.0
  %835 = vmatprep.subr.mxu0 0.0
  %836 = vmatpush1.xpose.msra.mxu0 0.0
  %837 = vmatprep.subr.mxu0 0.0
  %838 = vmatpush1.xpose.msra.mxu0 0.0
  %839 = vmatprep.subr.mxu0 0.0
  %840 = vmatpush1.xpose.msra.mxu0 0.0
  %841 = vmatprep.subr.mxu0 0.0
  %842 = vmatpush1.xpose.msra.mxu0 0.0
  %843 = vmatprep.mubr.f32.mxu0 0.0
  %844 = vmatmul.mubr.f32.gmra.mrb[0].mxu0 %v771
  %v845 = vpop.f32.mrb[0].mxu0
  %v846 = vadd.f32 0.0, %v845
  %v847 = vpop.f32.mrb[0].mxu0
  %848 = vdwg.mxu0
  %v850 = vsel %vm31, %v214, 0
  %v853 = vsel %vm31, %v764, 0
  %v856 = vsel %vm31, %v765, 0
  %858 = vmatprep.subr.mxu0 0.0
  %859 = vmatpush1.xpose.msra.mxu0 %v853
  %860 = vmatprep.subr.mxu0 0.0
  %861 = vmatpush1.xpose.msra.mxu0 %v856
  %862 = vmatprep.subr.mxu0 0.0
  %863 = vmatpush1.xpose.msra.mxu0 0.0
  %864 = vmatprep.subr.mxu0 0.0
  %865 = vmatpush1.xpose.msra.mxu0 0.0
  %866 = vmatprep.subr.mxu0 0.0
  %867 = vmatpush1.xpose.msra.mxu0 0.0
  %868 = vmatprep.subr.mxu0 0.0
  %869 = vmatpush1.xpose.msra.mxu0 0.0
  %870 = vmatprep.subr.mxu0 0.0
  %871 = vmatpush1.xpose.msra.mxu0 0.0
  %872 = vmatprep.subr.mxu0 0.0
  %873 = vmatpush1.xpose.msra.mxu0 0.0
  %874 = vmatprep.subr.mxu0 0.0
  %875 = vmatpush1.xpose.msra.mxu0 0.0
  %876 = vmatprep.subr.mxu0 0.0
  %877 = vmatpush1.xpose.msra.mxu0 0.0
  %878 = vmatprep.subr.mxu0 0.0
  %879 = vmatpush1.xpose.msra.mxu0 0.0
  %880 = vmatprep.subr.mxu0 0.0
  %881 = vmatpush1.xpose.msra.mxu0 0.0
  %882 = vmatprep.subr.mxu0 0.0
  %883 = vmatpush1.xpose.msra.mxu0 0.0
  %884 = vmatprep.subr.mxu0 0.0
  %885 = vmatpush1.xpose.msra.mxu0 0.0
  %886 = vmatprep.subr.mxu0 0.0
  %887 = vmatpush1.xpose.msra.mxu0 0.0
  %888 = vmatprep.subr.mxu0 0.0
  %889 = vmatpush1.xpose.msra.mxu0 0.0
  %890 = vmatprep.subr.mxu0 0.0
  %891 = vmatpush1.xpose.msra.mxu0 0.0
  %892 = vmatprep.subr.mxu0 0.0
  %893 = vmatpush1.xpose.msra.mxu0 0.0
  %894 = vmatprep.subr.mxu0 0.0
  %895 = vmatpush1.xpose.msra.mxu0 0.0
  %896 = vmatprep.subr.mxu0 0.0
  %897 = vmatpush1.xpose.msra.mxu0 0.0
  %898 = vmatprep.subr.mxu0 0.0
  %899 = vmatpush1.xpose.msra.mxu0 0.0
  %900 = vmatprep.subr.mxu0 0.0
  %901 = vmatpush1.xpose.msra.mxu0 0.0
  %902 = vmatprep.subr.mxu0 0.0
  %903 = vmatpush1.xpose.msra.mxu0 0.0
  %904 = vmatprep.subr.mxu0 0.0
  %905 = vmatpush1.xpose.msra.mxu0 0.0
  %906 = vmatprep.subr.mxu0 0.0
  %907 = vmatpush1.xpose.msra.mxu0 0.0
  %908 = vmatprep.subr.mxu0 0.0
  %909 = vmatpush1.xpose.msra.mxu0 0.0
  %910 = vmatprep.subr.mxu0 0.0
  %911 = vmatpush1.xpose.msra.mxu0 0.0
  %912 = vmatprep.subr.mxu0 0.0
  %913 = vmatpush1.xpose.msra.mxu0 0.0
  %914 = vmatprep.subr.mxu0 0.0
  %915 = vmatpush1.xpose.msra.mxu0 0.0
  %916 = vmatprep.subr.mxu0 0.0
  %917 = vmatpush1.xpose.msra.mxu0 0.0
  %918 = vmatprep.subr.mxu0 0.0
  %919 = vmatpush1.xpose.msra.mxu0 0.0
  %920 = vmatprep.subr.mxu0 0.0
  %921 = vmatpush1.xpose.msra.mxu0 0.0
  %922 = vmatprep.mubr.f32.mxu0 0.0
  %923 = vmatmul.mubr.f32.gmra.mrb[0].mxu0 %v850
  %v924 = vpop.f32.mrb[0].mxu0
  %v925 = vadd.f32 0.0, %v924
  %v926 = vpop.f32.mrb[0].mxu0
  %927 = vdwg.mxu0
  %v929 = vsel %vm31, %v219, 0
  %v932 = vsel %vm31, %v766, 0
  %v935 = vsel %vm31, %v767, 0
  %937 = vmatprep.subr.mxu0 0.0
  %938 = vmatpush1.xpose.msra.mxu0 %v932
  %939 = vmatprep.subr.mxu0 0.0
  %940 = vmatpush1.xpose.msra.mxu0 %v935
  %941 = vmatprep.subr.mxu0 0.0
  %942 = vmatpush1.xpose.msra.mxu0 0.0
  %943 = vmatprep.subr.mxu0 0.0
  %944 = vmatpush1.xpose.msra.mxu0 0.0
  %945 = vmatprep.subr.mxu0 0.0
  %946 = vmatpush1.xpose.msra.mxu0 0.0
  %947 = vmatprep.subr.mxu0 0.0
  %948 = vmatpush1.xpose.msra.mxu0 0.0
  %949 = vmatprep.subr.mxu0 0.0
  %950 = vmatpush1.xpose.msra.mxu0 0.0
  %951 = vmatprep.subr.mxu0 0.0
  %952 = vmatpush1.xpose.msra.mxu0 0.0
  %953 = vmatprep.subr.mxu0 0.0
  %954 = vmatpush1.xpose.msra.mxu0 0.0
  %955 = vmatprep.subr.mxu0 0.0
  %956 = vmatpush1.xpose.msra.mxu0 0.0
  %957 = vmatprep.subr.mxu0 0.0
  %958 = vmatpush1.xpose.msra.mxu0 0.0
  %959 = vmatprep.subr.mxu0 0.0
  %960 = vmatpush1.xpose.msra.mxu0 0.0
  %961 = vmatprep.subr.mxu0 0.0
  %962 = vmatpush1.xpose.msra.mxu0 0.0
  %963 = vmatprep.subr.mxu0 0.0
  %964 = vmatpush1.xpose.msra.mxu0 0.0
  %965 = vmatprep.subr.mxu0 0.0
  %966 = vmatpush1.xpose.msra.mxu0 0.0
  %967 = vmatprep.subr.mxu0 0.0
  %968 = vmatpush1.xpose.msra.mxu0 0.0
  %969 = vmatprep.subr.mxu0 0.0
  %970 = vmatpush1.xpose.msra.mxu0 0.0
  %971 = vmatprep.subr.mxu0 0.0
  %972 = vmatpush1.xpose.msra.mxu0 0.0
  %973 = vmatprep.subr.mxu0 0.0
  %974 = vmatpush1.xpose.msra.mxu0 0.0
  %975 = vmatprep.subr.mxu0 0.0
  %976 = vmatpush1.xpose.msra.mxu0 0.0
  %977 = vmatprep.subr.mxu0 0.0
  %978 = vmatpush1.xpose.msra.mxu0 0.0
  %979 = vmatprep.subr.mxu0 0.0
  %980 = vmatpush1.xpose.msra.mxu0 0.0
  %981 = vmatprep.subr.mxu0 0.0
  %982 = vmatpush1.xpose.msra.mxu0 0.0
  %983 = vmatprep.subr.mxu0 0.0
  %984 = vmatpush1.xpose.msra.mxu0 0.0
  %985 = vmatprep.subr.mxu0 0.0
  %986 = vmatpush1.xpose.msra.mxu0 0.0
  %987 = vmatprep.subr.mxu0 0.0
  %988 = vmatpush1.xpose.msra.mxu0 0.0
  %989 = vmatprep.subr.mxu0 0.0
  %990 = vmatpush1.xpose.msra.mxu0 0.0
  %991 = vmatprep.subr.mxu0 0.0
  %992 = vmatpush1.xpose.msra.mxu0 0.0
  %993 = vmatprep.subr.mxu0 0.0
  %994 = vmatpush1.xpose.msra.mxu0 0.0
  %995 = vmatprep.subr.mxu0 0.0
  %996 = vmatpush1.xpose.msra.mxu0 0.0
  %997 = vmatprep.subr.mxu0 0.0
  %998 = vmatpush1.xpose.msra.mxu0 0.0
  %999 = vmatprep.subr.mxu0 0.0
  %1000 = vmatpush1.xpose.msra.mxu0 0.0
  %1001 = vmatprep.mubr.f32.mxu0 0.0
  %1002 = vmatmul.mubr.f32.gmra.mrb[0].mxu0 %v929
  %v1003 = vpop.f32.mrb[0].mxu0
  %v1004 = vadd.f32 0.0, %v1003
  %v1005 = vpop.f32.mrb[0].mxu0
  %1006 = vdwg.mxu0
  %v1008 = vsel %vm31, %v224, 0
  %v1011 = vsel %vm31, %v768, 0
  %v1014 = vsel %vm31, %v769, 0
  %1016 = vmatprep.subr.mxu0 0.0
  %1017 = vmatpush1.xpose.msra.mxu0 %v1011
  %1018 = vmatprep.subr.mxu0 0.0
  %1019 = vmatpush1.xpose.msra.mxu0 %v1014
  %1020 = vmatprep.subr.mxu0 0.0
  %1021 = vmatpush1.xpose.msra.mxu0 0.0
  %1022 = vmatprep.subr.mxu0 0.0
  %1023 = vmatpush1.xpose.msra.mxu0 0.0
  %1024 = vmatprep.subr.mxu0 0.0
  %1025 = vmatpush1.xpose.msra.mxu0 0.0
  %1026 = vmatprep.subr.mxu0 0.0
  %1027 = vmatpush1.xpose.msra.mxu0 0.0
  %1028 = vmatprep.subr.mxu0 0.0
  %1029 = vmatpush1.xpose.msra.mxu0 0.0
  %1030 = vmatprep.subr.mxu0 0.0
  %1031 = vmatpush1.xpose.msra.mxu0 0.0
  %1032 = vmatprep.subr.mxu0 0.0
  %1033 = vmatpush1.xpose.msra.mxu0 0.0
  %1034 = vmatprep.subr.mxu0 0.0
  %1035 = vmatpush1.xpose.msra.mxu0 0.0
  %1036 = vmatprep.subr.mxu0 0.0
  %1037 = vmatpush1.xpose.msra.mxu0 0.0
  %1038 = vmatprep.subr.mxu0 0.0
  %1039 = vmatpush1.xpose.msra.mxu0 0.0
  %1040 = vmatprep.subr.mxu0 0.0
  %1041 = vmatpush1.xpose.msra.mxu0 0.0
  %1042 = vmatprep.subr.mxu0 0.0
  %1043 = vmatpush1.xpose.msra.mxu0 0.0
  %1044 = vmatprep.subr.mxu0 0.0
  %1045 = vmatpush1.xpose.msra.mxu0 0.0
  %1046 = vmatprep.subr.mxu0 0.0
  %1047 = vmatpush1.xpose.msra.mxu0 0.0
  %1048 = vmatprep.subr.mxu0 0.0
  %1049 = vmatpush1.xpose.msra.mxu0 0.0
  %1050 = vmatprep.subr.mxu0 0.0
  %1051 = vmatpush1.xpose.msra.mxu0 0.0
  %1052 = vmatprep.subr.mxu0 0.0
  %1053 = vmatpush1.xpose.msra.mxu0 0.0
  %1054 = vmatprep.subr.mxu0 0.0
  %1055 = vmatpush1.xpose.msra.mxu0 0.0
  %1056 = vmatprep.subr.mxu0 0.0
  %1057 = vmatpush1.xpose.msra.mxu0 0.0
  %1058 = vmatprep.subr.mxu0 0.0
  %1059 = vmatpush1.xpose.msra.mxu0 0.0
  %1060 = vmatprep.subr.mxu0 0.0
  %1061 = vmatpush1.xpose.msra.mxu0 0.0
  %1062 = vmatprep.subr.mxu0 0.0
  %1063 = vmatpush1.xpose.msra.mxu0 0.0
  %1064 = vmatprep.subr.mxu0 0.0
  %1065 = vmatpush1.xpose.msra.mxu0 0.0
  %1066 = vmatprep.subr.mxu0 0.0
  %1067 = vmatpush1.xpose.msra.mxu0 0.0
  %1068 = vmatprep.subr.mxu0 0.0
  %1069 = vmatpush1.xpose.msra.mxu0 0.0
  %1070 = vmatprep.subr.mxu0 0.0
  %1071 = vmatpush1.xpose.msra.mxu0 0.0
  %1072 = vmatprep.subr.mxu0 0.0
  %1073 = vmatpush1.xpose.msra.mxu0 0.0
  %1074 = vmatprep.subr.mxu0 0.0
  %1075 = vmatpush1.xpose.msra.mxu0 0.0
  %1076 = vmatprep.subr.mxu0 0.0
  %1077 = vmatpush1.xpose.msra.mxu0 0.0
  %1078 = vmatprep.subr.mxu0 0.0
  %1079 = vmatpush1.xpose.msra.mxu0 0.0
  %1080 = vmatprep.mubr.f32.mxu0 0.0
  %1081 = vmatmul.mubr.f32.gmra.mrb[0].mxu0 %v1008
  %v1082 = vpop.f32.mrb[0].mxu0
  %v1083 = vadd.f32 0.0, %v1082
  %v1084 = vpop.f32.mrb[0].mxu0
  %1085 = vdwg.mxu0
  %v1086 = vld [vmem:[%s2] sm:$0xff]
  %v1087 = vld [vmem:[%s2 + $0x8] sm:$0xff]
  %v1088 = vld [vmem:[%s2 + $0x10] sm:$0xff]
  %v1089 = vld [vmem:[%s2 + $0x18] sm:$0xff]
  %v1091 = vsel %vm65, %v1086, 0
  %v1094 = vsel %vm65, %v1087, 0
  %v1097 = vsel %vm65, %v1088, 0
  %v1100 = vsel %vm65, %v1089, 0
  %1102 = vmatprep.subr.mxu0 0.0
  %1103 = vmatpush1.msra.mxu0 %v846
  %1104 = vmatprep.subr.mxu0 0.0
  %1105 = vmatpush1.msra.mxu0 %v925
  %1106 = vmatprep.subr.mxu0 0.0
  %1107 = vmatpush1.msra.mxu0 %v1004
  %1108 = vmatprep.subr.mxu0 0.0
  %1109 = vmatpush1.msra.mxu0 %v1083
  %1110 = vmatprep.subr.mxu0 0.0
  %1111 = vmatpush1.msra.mxu0 0.0
  %1112 = vmatprep.subr.mxu0 0.0
  %1113 = vmatpush1.msra.mxu0 0.0
  %1114 = vmatprep.subr.mxu0 0.0
  %1115 = vmatpush1.msra.mxu0 0.0
  %1116 = vmatprep.subr.mxu0 0.0
  %1117 = vmatpush1.msra.mxu0 0.0
  %1118 = vmatprep.subr.mxu0 0.0
  %1119 = vmatpush1.msra.mxu0 0.0
  %1120 = vmatprep.subr.mxu0 0.0
  %1121 = vmatpush1.msra.mxu0 0.0
  %1122 = vmatprep.subr.mxu0 0.0
  %1123 = vmatpush1.msra.mxu0 0.0
  %1124 = vmatprep.subr.mxu0 0.0
  %1125 = vmatpush1.msra.mxu0 0.0
  %1126 = vmatprep.subr.mxu0 0.0
  %1127 = vmatpush1.msra.mxu0 0.0
  %1128 = vmatprep.subr.mxu0 0.0
  %1129 = vmatpush1.msra.mxu0 0.0
  %1130 = vmatprep.subr.mxu0 0.0
  %1131 = vmatpush1.msra.mxu0 0.0
  %1132 = vmatprep.subr.mxu0 0.0
  %1133 = vmatpush1.msra.mxu0 0.0
  %1134 = vmatprep.subr.mxu0 0.0
  %1135 = vmatpush1.msra.mxu0 0.0
  %1136 = vmatprep.subr.mxu0 0.0
  %1137 = vmatpush1.msra.mxu0 0.0
  %1138 = vmatprep.subr.mxu0 0.0
  %1139 = vmatpush1.msra.mxu0 0.0
  %1140 = vmatprep.subr.mxu0 0.0
  %1141 = vmatpush1.msra.mxu0 0.0
  %1142 = vmatprep.subr.mxu0 0.0
  %1143 = vmatpush1.msra.mxu0 0.0
  %1144 = vmatprep.subr.mxu0 0.0
  %1145 = vmatpush1.msra.mxu0 0.0
  %1146 = vmatprep.subr.mxu0 0.0
  %1147 = vmatpush1.msra.mxu0 0.0
  %1148 = vmatprep.subr.mxu0 0.0
  %1149 = vmatpush1.msra.mxu0 0.0
  %1150 = vmatprep.subr.mxu0 0.0
  %1151 = vmatpush1.msra.mxu0 0.0
  %1152 = vmatprep.subr.mxu0 0.0
  %1153 = vmatpush1.msra.mxu0 0.0
  %1154 = vmatprep.subr.mxu0 0.0
  %1155 = vmatpush1.msra.mxu0 0.0
  %1156 = vmatprep.subr.mxu0 0.0
  %1157 = vmatpush1.msra.mxu0 0.0
  %1158 = vmatprep.subr.mxu0 0.0
  %1159 = vmatpush1.msra.mxu0 0.0
  %1160 = vmatprep.subr.mxu0 0.0
  %1161 = vmatpush1.msra.mxu0 0.0
  %1162 = vmatprep.subr.mxu0 0.0
  %1163 = vmatpush1.msra.mxu0 0.0
  %1164 = vmatprep.subr.mxu0 0.0
  %1165 = vmatpush1.msra.mxu0 0.0
  %1166 = vmatprep.mubr.f32.mxu0 0.0
  %1167 = vmatmul.mubr.f32.gmra.mrb[0].mxu0 %v1091
  %v1168 = vpop.f32.mrb[0].mxu0
  %v1169 = vadd.f32 0.0, %v1168
  %v1170 = vpop.f32.mrb[0].mxu0
  %1171 = vmatprep.mubr.f32.mxu0 0.0
  %1172 = vmatmul.mubr.f32.gmra.mrb[0].mxu0 %v1094
  %v1173 = vpop.f32.mrb[0].mxu0
  %v1174 = vadd.f32 0.0, %v1173
  %v1175 = vpop.f32.mrb[0].mxu0
  %1176 = vmatprep.mubr.f32.mxu0 0.0
  %1177 = vmatmul.mubr.f32.gmra.mrb[0].mxu0 %v1097
  %v1178 = vpop.f32.mrb[0].mxu0
  %v1179 = vadd.f32 0.0, %v1178
  %v1180 = vpop.f32.mrb[0].mxu0
  %1181 = vmatprep.mubr.f32.mxu0 0.0
  %1182 = vmatmul.mubr.f32.gmra.mrb[0].mxu0 %v1100
  %v1183 = vpop.f32.mrb[0].mxu0
  %v1184 = vadd.f32 0.0, %v1183
  %v1185 = vpop.f32.mrb[0].mxu0
  %1186 = vdwg.mxu0
  %v1187 = vadd.f32 %v23, %v1169
  %v1188 = vadd.f32 %v24, %v1174
  %v1189 = vadd.f32 %v25, %v1179
  %v1190 = vadd.f32 %v26, %v1184
  %v1191 = vmul.f32 %v1187, %v1187
  %v1192 = vmul.f32 %v1188, %v1188
  %v1193 = vmul.f32 %v1189, %v1189
  %v1194 = vmul.f32 %v1190, %v1190
  %v1195 = vsel %vm31, %v1191, 0.0
  %v1196 = vsel %vm31, %v1192, 0.0
  %v1197 = vadd.f32 %v1195, %v1196
  %v1198 = vsel %vm31, %v1193, 0.0
  %v1199 = vadd.f32 %v1197, %v1198
  %v1200 = vsel %vm31, %v1194, 0.0
  %v1201 = vadd.f32 %v1199, %v1200
  %v1202 = vrot.slane %v1201, 4
  %v1203 = vadd.f32 %v1201, %v1202
  %v1204 = vrot.slane %v1203, 2
  %v1205 = vadd.f32 %v1203, %v1204
  %v1206 = vrot.slane %v1205, 1
  %v1207 = vadd.f32 %v1205, %v1206
  %v1208 = vmul.f32 %v1207, %v45
  %v1209 = vadd.f32 %v1208, 1e-05
  %v1210 = vrsqrt.pop %v1209
  %v1211 = vmul.f32 %v1187, %v1210
  %v1212 = vmul.f32 %v1188, %v1210
  %v1213 = vmul.f32 %v1189, %v1210
  %v1214 = vmul.f32 %v1190, %v1210
  %v1215 = vld [vmem:[%s3] sm:$0xff]
  %v1216 = vld [vmem:[%s3 + $0x8] sm:$0xff]
  %v1217 = vld [vmem:[%s3 + $0x10] sm:$0xff]
  %v1218 = vld [vmem:[%s3 + $0x18] sm:$0xff]
  %v1219 = vld [vmem:[%s3 + $0x20] sm:$0xff]
  %v1220 = vld [vmem:[%s3 + $0x28] sm:$0xff]
  %v1221 = vld [vmem:[%s3 + $0x30] sm:$0xff]
  %v1222 = vld [vmem:[%s3 + $0x38] sm:$0xff]
  %v1224 = vsel %vm65, %v1215, 0
  %v1227 = vsel %vm65, %v1216, 0
  %v1230 = vsel %vm65, %v1217, 0
  %v1233 = vsel %vm65, %v1218, 0
  %v1236 = vsel %vm65, %v1219, 0
  %v1239 = vsel %vm65, %v1220, 0
  %v1242 = vsel %vm65, %v1221, 0
  %v1245 = vsel %vm65, %v1222, 0
  %1247 = vmatprep.subr.mxu0 0.0
  %1248 = vmatpush1.msra.mxu0 %v1211
  %1249 = vmatprep.subr.mxu0 0.0
  %1250 = vmatpush1.msra.mxu0 %v1212
  %1251 = vmatprep.subr.mxu0 0.0
  %1252 = vmatpush1.msra.mxu0 %v1213
  %1253 = vmatprep.subr.mxu0 0.0
  %1254 = vmatpush1.msra.mxu0 %v1214
  %1255 = vmatprep.subr.mxu0 0.0
  %1256 = vmatpush1.msra.mxu0 0.0
  %1257 = vmatprep.subr.mxu0 0.0
  %1258 = vmatpush1.msra.mxu0 0.0
  %1259 = vmatprep.subr.mxu0 0.0
  %1260 = vmatpush1.msra.mxu0 0.0
  %1261 = vmatprep.subr.mxu0 0.0
  %1262 = vmatpush1.msra.mxu0 0.0
  %1263 = vmatprep.subr.mxu0 0.0
  %1264 = vmatpush1.msra.mxu0 0.0
  %1265 = vmatprep.subr.mxu0 0.0
  %1266 = vmatpush1.msra.mxu0 0.0
  %1267 = vmatprep.subr.mxu0 0.0
  %1268 = vmatpush1.msra.mxu0 0.0
  %1269 = vmatprep.subr.mxu0 0.0
  %1270 = vmatpush1.msra.mxu0 0.0
  %1271 = vmatprep.subr.mxu0 0.0
  %1272 = vmatpush1.msra.mxu0 0.0
  %1273 = vmatprep.subr.mxu0 0.0
  %1274 = vmatpush1.msra.mxu0 0.0
  %1275 = vmatprep.subr.mxu0 0.0
  %1276 = vmatpush1.msra.mxu0 0.0
  %1277 = vmatprep.subr.mxu0 0.0
  %1278 = vmatpush1.msra.mxu0 0.0
  %1279 = vmatprep.subr.mxu0 0.0
  %1280 = vmatpush1.msra.mxu0 0.0
  %1281 = vmatprep.subr.mxu0 0.0
  %1282 = vmatpush1.msra.mxu0 0.0
  %1283 = vmatprep.subr.mxu0 0.0
  %1284 = vmatpush1.msra.mxu0 0.0
  %1285 = vmatprep.subr.mxu0 0.0
  %1286 = vmatpush1.msra.mxu0 0.0
  %1287 = vmatprep.subr.mxu0 0.0
  %1288 = vmatpush1.msra.mxu0 0.0
  %1289 = vmatprep.subr.mxu0 0.0
  %1290 = vmatpush1.msra.mxu0 0.0
  %1291 = vmatprep.subr.mxu0 0.0
  %1292 = vmatpush1.msra.mxu0 0.0
  %1293 = vmatprep.subr.mxu0 0.0
  %1294 = vmatpush1.msra.mxu0 0.0
  %1295 = vmatprep.subr.mxu0 0.0
  %1296 = vmatpush1.msra.mxu0 0.0
  %1297 = vmatprep.subr.mxu0 0.0
  %1298 = vmatpush1.msra.mxu0 0.0
  %1299 = vmatprep.subr.mxu0 0.0
  %1300 = vmatpush1.msra.mxu0 0.0
  %1301 = vmatprep.subr.mxu0 0.0
  %1302 = vmatpush1.msra.mxu0 0.0
  %1303 = vmatprep.subr.mxu0 0.0
  %1304 = vmatpush1.msra.mxu0 0.0
  %1305 = vmatprep.subr.mxu0 0.0
  %1306 = vmatpush1.msra.mxu0 0.0
  %1307 = vmatprep.subr.mxu0 0.0
  %1308 = vmatpush1.msra.mxu0 0.0
  %1309 = vmatprep.subr.mxu0 0.0
  %1310 = vmatpush1.msra.mxu0 0.0
  %1311 = vmatprep.mubr.f32.mxu0 0.0
  %1312 = vmatmul.mubr.f32.gmra.mrb[0].mxu0 %v1224
  %v1313 = vpop.f32.mrb[0].mxu0
  %v1314 = vadd.f32 0.0, %v1313
  %v1315 = vpop.f32.mrb[0].mxu0
  %1316 = vmatprep.mubr.f32.mxu0 0.0
  %1317 = vmatmul.mubr.f32.gmra.mrb[0].mxu0 %v1227
  %v1318 = vpop.f32.mrb[0].mxu0
  %v1319 = vadd.f32 0.0, %v1318
  %v1320 = vpop.f32.mrb[0].mxu0
  %1321 = vmatprep.mubr.f32.mxu0 0.0
  %1322 = vmatmul.mubr.f32.gmra.mrb[0].mxu0 %v1230
  %v1323 = vpop.f32.mrb[0].mxu0
  %v1324 = vadd.f32 0.0, %v1323
  %v1325 = vpop.f32.mrb[0].mxu0
  %1326 = vmatprep.mubr.f32.mxu0 0.0
  %1327 = vmatmul.mubr.f32.gmra.mrb[0].mxu0 %v1233
  %v1328 = vpop.f32.mrb[0].mxu0
  %v1329 = vadd.f32 0.0, %v1328
  %v1330 = vpop.f32.mrb[0].mxu0
  %1331 = vmatprep.mubr.f32.mxu0 0.0
  %1332 = vmatmul.mubr.f32.gmra.mrb[0].mxu0 %v1236
  %v1333 = vpop.f32.mrb[0].mxu0
  %v1334 = vadd.f32 0.0, %v1333
  %v1335 = vpop.f32.mrb[0].mxu0
  %1336 = vmatprep.mubr.f32.mxu0 0.0
  %1337 = vmatmul.mubr.f32.gmra.mrb[0].mxu0 %v1239
  %v1338 = vpop.f32.mrb[0].mxu0
  %v1339 = vadd.f32 0.0, %v1338
  %v1340 = vpop.f32.mrb[0].mxu0
  %1341 = vmatprep.mubr.f32.mxu0 0.0
  %1342 = vmatmul.mubr.f32.gmra.mrb[0].mxu0 %v1242
  %v1343 = vpop.f32.mrb[0].mxu0
  %v1344 = vadd.f32 0.0, %v1343
  %v1345 = vpop.f32.mrb[0].mxu0
  %1346 = vmatprep.mubr.f32.mxu0 0.0
  %1347 = vmatmul.mubr.f32.gmra.mrb[0].mxu0 %v1245
  %v1348 = vpop.f32.mrb[0].mxu0
  %v1349 = vadd.f32 0.0, %v1348
  %v1350 = vpop.f32.mrb[0].mxu0
  %1351 = vdwg.mxu0
  %v1352 = vsub.f32 0.0, %v1314
  %v1353 = vsub.f32 0.0, %v1319
  %v1354 = vsub.f32 0.0, %v1324
  %v1355 = vsub.f32 0.0, %v1329
  %v1356 = vsub.f32 0.0, %v1334
  %v1357 = vsub.f32 0.0, %v1339
  %v1358 = vsub.f32 0.0, %v1344
  %v1359 = vsub.f32 0.0, %v1349
  %v1360 = vmul.f32 %v1352, 1.442695
  %v1361 = vpow.pop %v1360
  %v1362 = vmul.f32 %v1353, 1.442695
  %v1363 = vpow.pop %v1362
  %v1364 = vmul.f32 %v1354, 1.442695
  %v1365 = vpow.pop %v1364
  %v1366 = vmul.f32 %v1355, 1.442695
  %v1367 = vpow.pop %v1366
  %v1368 = vmul.f32 %v1356, 1.442695
  %v1369 = vpow.pop %v1368
  %v1370 = vmul.f32 %v1357, 1.442695
  %v1371 = vpow.pop %v1370
  %v1372 = vmul.f32 %v1358, 1.442695
  %v1373 = vpow.pop %v1372
  %v1374 = vmul.f32 %v1359, 1.442695
  %v1375 = vpow.pop %v1374
  %v1376 = vadd.f32 %v1361, 1.0
  %v1377 = vadd.f32 %v1363, 1.0
  %v1378 = vadd.f32 %v1365, 1.0
  %v1379 = vadd.f32 %v1367, 1.0
  %v1380 = vadd.f32 %v1369, 1.0
  %v1381 = vadd.f32 %v1371, 1.0
  %v1382 = vadd.f32 %v1373, 1.0
  %v1383 = vadd.f32 %v1375, 1.0
  %v1384 = vrcp.pop %v1376
  %v1385 = vmul.f32 1.0, %v1384
  %v1386 = vrcp.pop %v1377
  %v1387 = vmul.f32 1.0, %v1386
  %v1388 = vrcp.pop %v1378
  %v1389 = vmul.f32 1.0, %v1388
  %v1390 = vrcp.pop %v1379
  %v1391 = vmul.f32 1.0, %v1390
  %v1392 = vrcp.pop %v1380
  %v1393 = vmul.f32 1.0, %v1392
  %v1394 = vrcp.pop %v1381
  %v1395 = vmul.f32 1.0, %v1394
  %v1396 = vrcp.pop %v1382
  %v1397 = vmul.f32 1.0, %v1396
  %v1398 = vrcp.pop %v1383
  %v1399 = vmul.f32 1.0, %v1398
  %v1400 = vmul.f32 %v1314, %v1385
  %v1401 = vmul.f32 %v1319, %v1387
  %v1402 = vmul.f32 %v1324, %v1389
  %v1403 = vmul.f32 %v1329, %v1391
  %v1404 = vmul.f32 %v1334, %v1393
  %v1405 = vmul.f32 %v1339, %v1395
  %v1406 = vmul.f32 %v1344, %v1397
  %v1407 = vmul.f32 %v1349, %v1399
  %v1408 = vld [vmem:[%s4] sm:$0xff]
  %v1409 = vld [vmem:[%s4 + $0x8] sm:$0xff]
  %v1410 = vld [vmem:[%s4 + $0x10] sm:$0xff]
  %v1411 = vld [vmem:[%s4 + $0x18] sm:$0xff]
  %vm1412 = vcmask 523264
  %v1414 = vsel %vm1412, %v1408, 0
  %v1417 = vsel %vm1412, %v1409, 0
  %v1420 = vsel %vm1412, %v1410, 0
  %v1423 = vsel %vm1412, %v1411, 0
  %1425 = vmatprep.subr.mxu0 0.0
  %1426 = vmatpush1.msra.mxu0 %v1400
  %1427 = vmatprep.subr.mxu0 0.0
  %1428 = vmatpush1.msra.mxu0 %v1401
  %1429 = vmatprep.subr.mxu0 0.0
  %1430 = vmatpush1.msra.mxu0 %v1402
  %1431 = vmatprep.subr.mxu0 0.0
  %1432 = vmatpush1.msra.mxu0 %v1403
  %1433 = vmatprep.subr.mxu0 0.0
  %1434 = vmatpush1.msra.mxu0 %v1404
  %1435 = vmatprep.subr.mxu0 0.0
  %1436 = vmatpush1.msra.mxu0 %v1405
  %1437 = vmatprep.subr.mxu0 0.0
  %1438 = vmatpush1.msra.mxu0 %v1406
  %1439 = vmatprep.subr.mxu0 0.0
  %1440 = vmatpush1.msra.mxu0 %v1407
  %1441 = vmatprep.subr.mxu0 0.0
  %1442 = vmatpush1.msra.mxu0 0.0
  %1443 = vmatprep.subr.mxu0 0.0
  %1444 = vmatpush1.msra.mxu0 0.0
  %1445 = vmatprep.subr.mxu0 0.0
  %1446 = vmatpush1.msra.mxu0 0.0
  %1447 = vmatprep.subr.mxu0 0.0
  %1448 = vmatpush1.msra.mxu0 0.0
  %1449 = vmatprep.subr.mxu0 0.0
  %1450 = vmatpush1.msra.mxu0 0.0
  %1451 = vmatprep.subr.mxu0 0.0
  %1452 = vmatpush1.msra.mxu0 0.0
  %1453 = vmatprep.subr.mxu0 0.0
  %1454 = vmatpush1.msra.mxu0 0.0
  %1455 = vmatprep.subr.mxu0 0.0
  %1456 = vmatpush1.msra.mxu0 0.0
  %1457 = vmatprep.subr.mxu0 0.0
  %1458 = vmatpush1.msra.mxu0 0.0
  %1459 = vmatprep.subr.mxu0 0.0
  %1460 = vmatpush1.msra.mxu0 0.0
  %1461 = vmatprep.subr.mxu0 0.0
  %1462 = vmatpush1.msra.mxu0 0.0
  %1463 = vmatprep.subr.mxu0 0.0
  %1464 = vmatpush1.msra.mxu0 0.0
  %1465 = vmatprep.subr.mxu0 0.0
  %1466 = vmatpush1.msra.mxu0 0.0
  %1467 = vmatprep.subr.mxu0 0.0
  %1468 = vmatpush1.msra.mxu0 0.0
  %1469 = vmatprep.subr.mxu0 0.0
  %1470 = vmatpush1.msra.mxu0 0.0
  %1471 = vmatprep.subr.mxu0 0.0
  %1472 = vmatpush1.msra.mxu0 0.0
  %1473 = vmatprep.subr.mxu0 0.0
  %1474 = vmatpush1.msra.mxu0 0.0
  %1475 = vmatprep.subr.mxu0 0.0
  %1476 = vmatpush1.msra.mxu0 0.0
  %1477 = vmatprep.subr.mxu0 0.0
  %1478 = vmatpush1.msra.mxu0 0.0
  %1479 = vmatprep.subr.mxu0 0.0
  %1480 = vmatpush1.msra.mxu0 0.0
  %1481 = vmatprep.subr.mxu0 0.0
  %1482 = vmatpush1.msra.mxu0 0.0
  %1483 = vmatprep.subr.mxu0 0.0
  %1484 = vmatpush1.msra.mxu0 0.0
  %1485 = vmatprep.subr.mxu0 0.0
  %1486 = vmatpush1.msra.mxu0 0.0
  %1487 = vmatprep.subr.mxu0 0.0
  %1488 = vmatpush1.msra.mxu0 0.0
  %1489 = vmatprep.mubr.f32.mxu0 0.0
  %1490 = vmatmul.mubr.f32.gmra.mrb[0].mxu0 %v1414
  %v1491 = vpop.f32.mrb[0].mxu0
  %v1492 = vadd.f32 0.0, %v1491
  %v1493 = vpop.f32.mrb[0].mxu0
  %1494 = vmatprep.mubr.f32.mxu0 0.0
  %1495 = vmatmul.mubr.f32.gmra.mrb[0].mxu0 %v1417
  %v1496 = vpop.f32.mrb[0].mxu0
  %v1497 = vadd.f32 0.0, %v1496
  %v1498 = vpop.f32.mrb[0].mxu0
  %1499 = vmatprep.mubr.f32.mxu0 0.0
  %1500 = vmatmul.mubr.f32.gmra.mrb[0].mxu0 %v1420
  %v1501 = vpop.f32.mrb[0].mxu0
  %v1502 = vadd.f32 0.0, %v1501
  %v1503 = vpop.f32.mrb[0].mxu0
  %1504 = vmatprep.mubr.f32.mxu0 0.0
  %1505 = vmatmul.mubr.f32.gmra.mrb[0].mxu0 %v1423
  %v1506 = vpop.f32.mrb[0].mxu0
  %v1507 = vadd.f32 0.0, %v1506
  %v1508 = vpop.f32.mrb[0].mxu0
  %1509 = vdwg.mxu0
  %v1510 = vadd.f32 %v1187, %v1492
  %v1511 = vadd.f32 %v1188, %v1497
  %v1512 = vadd.f32 %v1189, %v1502
  %v1513 = vadd.f32 %v1190, %v1507
  %1514 = vst.msk [vmem:[%s6] sm:$0xff] %vm31, %v1510
  %1515 = vst.msk [vmem:[%s6 + $0x8] sm:$0xff] %vm31, %v1511
  %1516 = vst.msk [vmem:[%s6 + $0x10] sm:$0xff] %vm31, %v1512
  %1517 = vst.msk [vmem:[%s6 + $0x18] sm:$0xff] %vm31, %v1513
  // Predicated region
  $region26: #{tpu_custom_call.1} parent=0 // pred_check
    _
  $region27: #{tpu_custom_call.1} parent=0 // pred_check_branch
    %1519 = sbr.rel (0) target = $region29
  $region28: #{tpu_custom_call.1} parent=0 // pred_region
    _
  $region29: #{tpu_custom_call.1} parent=0 // pred_fallthru
    _
  // Predicated region
  $region30: #{tpu_custom_call.1} parent=0 // pred_check
    _
  $region31: #{tpu_custom_call.1} parent=0 // pred_check_branch
    %1521 = sbr.rel (0) target = $region33
  $region32: #{tpu_custom_call.1} parent=0 // pred_region
    _
  $region33: #{tpu_custom_call.1} parent=0 // pred_fallthru
    _

</llo_original>
